<compile_context>
chip_gen: v5e
topology: v5e:2x2
jax: 0.10.0
libtpu: 0.0.40
codegen_flags: <defaults>
</compile_context>

<pallas_src>
import jax
import jax.numpy as jnp
import numpy as np
from jax.experimental import pallas as pl
from jax.experimental.pallas import tpu as pltpu

KK = 5  # conv kernel size


def _round_up(a, m):
    return (a + m - 1) // m * m


# ---------------------------------------------------------------------------
# Fused conv (im2col matmul) + 2x2/2 maxpool + bias + ReLU kernel
# ---------------------------------------------------------------------------
def _conv_pool_kernel(xcol_ref, w_ref, b_ref, o_ref):
    """One grid step = one image.

    xcol_ref : (1, 4, PR, K)  im2col LHS; axis 1 enumerates the 2x2 pool
                              window (di, dj), rows are the PR pooled output
                              positions in raster order, lanes are (tap, cin).
    w_ref    : (K, CO)        repacked conv weight, rows in (ki, kj, ci) order.
    b_ref    : (1, CO)
    o_ref    : (1, PR, CO)    pooled + bias + ReLU output for this image.
    """
    w = w_ref[...]
    # maxpool == running max over the 4 window positions; bias/ReLU commute
    # with the max, so they are applied once on the pooled rows only.
    m = jnp.dot(xcol_ref[0, 0], w, preferred_element_type=jnp.float32)
    for d in range(1, 4):
        m = jnp.maximum(
            m, jnp.dot(xcol_ref[0, d], w, preferred_element_type=jnp.float32))
    o_ref[0] = jnp.maximum(m + b_ref[...], 0.0)


def conv_relu_pool(xcol, w, b):
    """xcol: (N, 4, PR, K) -> (N, PR, CO) pooled/ReLU'd conv output."""
    n, four, pr, k = xcol.shape
    co = w.shape[1]
    flops = 2 * n * four * pr * k * co
    bytes_accessed = 4 * (xcol.size + w.size + b.size + n * pr * co)
    return pl.pallas_call(
        _conv_pool_kernel,
        out_shape=jax.ShapeDtypeStruct((n, pr, co), jnp.float32),
        grid=(n,),
        in_specs=[
            pl.BlockSpec((1, four, pr, k), lambda i: (i, 0, 0, 0)),
            pl.BlockSpec((k, co), lambda i: (0, 0)),       # resident weight
            pl.BlockSpec((1, co), lambda i: (0, 0)),       # resident bias
        ],
        out_specs=pl.BlockSpec((1, pr, co), lambda i: (i, 0, 0)),
        compiler_params=pltpu.CompilerParams(
            dimension_semantics=("parallel",)),            # images -> cores
        cost_estimate=pl.CostEstimate(flops=flops, transcendentals=0,
                                      bytes_accessed=bytes_accessed),
    )(xcol, w, b)


# ---------------------------------------------------------------------------
# Fused fc1 + ReLU + fc2 + ReLU + fc3 kernel (single invocation, no grid)
# ---------------------------------------------------------------------------
def _fc_kernel(h_ref, w1_ref, b1_ref, w2_ref, b2_ref, w3_ref, b3_ref, o_ref):
    h1 = jnp.maximum(
        jnp.dot(h_ref[...], w1_ref[...], preferred_element_type=jnp.float32)
        + b1_ref[...], 0.0)
    h2 = jnp.maximum(
        jnp.dot(h1, w2_ref[...], preferred_element_type=jnp.float32)
        + b2_ref[...], 0.0)
    o_ref[...] = (jnp.dot(h2, w3_ref[...], preferred_element_type=jnp.float32)
                  + b3_ref[...])


def _full_spec(a):
    nd = a.ndim
    return pl.BlockSpec(a.shape, lambda: (0,) * nd)


def fc_fused(h, w1, b1, w2, b2, w3, b3):
    n = h.shape[0]
    co = w3.shape[1]
    args = (h, w1, b1, w2, b2, w3, b3)
    flops = 2 * n * (w1.shape[0] * w1.shape[1] + w2.shape[0] * w2.shape[1]
                     + w3.shape[0] * w3.shape[1])
    bytes_accessed = 4 * (sum(a.size for a in args) + n * co)
    return pl.pallas_call(
        _fc_kernel,
        out_shape=jax.ShapeDtypeStruct((n, co), jnp.float32),
        in_specs=[_full_spec(a) for a in args],
        out_specs=pl.BlockSpec((n, co), lambda: (0, 0)),
        cost_estimate=pl.CostEstimate(flops=flops, transcendentals=0,
                                      bytes_accessed=bytes_accessed),
    )(*args)


# ---------------------------------------------------------------------------
# Parameters: torch-shaped init + one-time kernel-friendly repack
# ---------------------------------------------------------------------------
def init_params(key):
    def uniform(k, shape, fan_in):
        bound = 1.0 / float(fan_in) ** 0.5
        return jax.random.uniform(k, shape, jnp.float32, -bound, bound)

    ks = jax.random.split(key, 10)
    return {
        "conv1_w": uniform(ks[0], (32, 3, 5, 5), 3 * 5 * 5),
        "conv1_b": uniform(ks[1], (32,), 3 * 5 * 5),
        "conv2_w": uniform(ks[2], (16, 32, 5, 5), 32 * 5 * 5),
        "conv2_b": uniform(ks[3], (16,), 32 * 5 * 5),
        "fc1_w": uniform(ks[4], (16 * 5 * 5, 64), 16 * 5 * 5),  # (in, out)
        "fc1_b": uniform(ks[5], (64,), 16 * 5 * 5),
        "fc2_w": uniform(ks[6], (64, 32), 64),
        "fc2_b": uniform(ks[7], (32,), 64),
        "fc3_w": uniform(ks[8], (32, 10), 32),
        "fc3_b": uniform(ks[9], (10,), 32),
    }


def prepare_params(p):
    """One-time repack of the torch-shaped params into kernel matrices."""
    f32 = jnp.float32

    # conv weights -> (K, Cout) with rows in (ki, kj, ci) order, matching the
    # im2col lane order built in forward(); conv1 K padded 75 -> 128 (zeros).
    w1 = jnp.transpose(p["conv1_w"], (2, 3, 1, 0)).reshape(KK * KK * 3, 32)
    w1 = jnp.pad(w1, ((0, 128 - KK * KK * 3), (0, 0))).astype(f32)   # (128, 32)
    b1 = p["conv1_b"].reshape(1, 32).astype(f32)

    w2 = jnp.transpose(p["conv2_w"], (2, 3, 1, 0)).reshape(KK * KK * 32, 16)
    w2 = w2.astype(f32)                                              # (800, 16)
    b2 = p["conv2_b"].reshape(1, 16).astype(f32)

    # fc1 rows are in torch NCHW-flatten order (c*25 + pos); the conv2 kernel
    # produces (pos*16 + c) order, so permute the rows once here.
    fc1 = jnp.transpose(p["fc1_w"].reshape(16, 25, 64),
                        (1, 0, 2)).reshape(400, 64).astype(f32)
    fb1 = p["fc1_b"].reshape(1, 64).astype(f32)

    fc2 = p["fc2_w"].astype(f32)
    fb2 = p["fc2_b"].reshape(1, 32).astype(f32)

    # fc3: pad output to 128 lanes (zero cols) for a lane-dense final store.
    fc3 = jnp.zeros((32, 128), f32).at[:, :10].set(p["fc3_w"])
    fb3 = jnp.zeros((1, 128), f32).at[0, :10].set(p["fc3_b"])

    return {"w1": w1, "b1": b1, "w2": w2, "b2": b2,
            "fc1": fc1, "fb1": fb1, "fc2": fc2, "fb2": fb2,
            "fc3": fc3, "fb3": fb3}


# ---------------------------------------------------------------------------
# Wrapper-side layout plumbing (tiny tensors; pure XLA)
# ---------------------------------------------------------------------------
def _im2col_pool_groups(x_nhwc, kk):
    """(N, H, W, C) -> (N, 4, PR, kk*kk*C) im2col slab.

    Lanes = (ki, kj, ci); rows = pooled-output positions (i, j) in raster
    order; axis 1 = the 2x2 pool window (di, dj), so the conv kernel can fuse
    the maxpool as a running max over 4 dots.
    """
    n, h, w, c = x_nhwc.shape
    oh, ow = h - kk + 1, w - kk + 1          # valid conv output
    ph, pw = oh // 2, ow // 2                # pooled output
    taps = [x_nhwc[:, ki:ki + oh, kj:kj + ow, :]
            for ki in range(kk) for kj in range(kk)]
    col = jnp.concatenate(taps, axis=-1)                 # (N, OH, OW, kk*kk*C)
    col = col[:, :2 * ph, :2 * pw, :]                    # even pool coverage
    col = col.reshape(n, ph, 2, pw, 2, kk * kk * c)
    col = jnp.transpose(col, (0, 2, 4, 1, 3, 5))         # (N, 2, 2, PH, PW, K)
    return col.reshape(n, 4, ph * pw, kk * kk * c)


@jax.jit
def forward(kp, x):
    """x: (N, 3, 32, 32) float32 NCHW -> logits (N, 10)."""
    n = x.shape[0]

    # conv1 + ReLU + pool : 32x32x3 -> 14x14x32
    x1 = jnp.transpose(x, (0, 2, 3, 1))                  # NHWC
    c1 = _im2col_pool_groups(x1, KK)                     # (N, 4, 196, 75)
    c1 = jnp.pad(c1, ((0, 0), (0, 0), (0, 0), (0, 128 - c1.shape[-1])))
    h1 = conv_relu_pool(c1, kp["w1"], kp["b1"])          # (N, 196, 32)

    # conv2 + ReLU + pool : 14x14x32 -> 5x5x16
    h1 = h1.reshape(n, 14, 14, 32)
    c2 = _im2col_pool_groups(h1, KK)                     # (N, 4, 25, 800)
    h2 = conv_relu_pool(c2, kp["w2"], kp["b2"])          # (N, 25, 16)

    # fc1 + ReLU + fc2 + ReLU + fc3 (flatten permutation folded into fc1)
    hf = h2.reshape(n, 400)
    npad = max(8, _round_up(n, 8))                       # pad M to MXU granule
    hf = jnp.pad(hf, ((0, npad - n), (0, 0)))
    logits = fc_fused(hf, kp["fc1"], kp["fb1"], kp["fc2"], kp["fb2"],
                      kp["fc3"], kp["fb3"])              # (npad, 128)
    return logits[:n, :10]


# ---------------------------------------------------------------------------
# Pure-JAX reference (for runtime correctness check)
# ---------------------------------------------------------------------------
def reference_forward(p, x):
    hi = jax.lax.Precision.HIGHEST
    y = jax.lax.conv_general_dilated(
        x, p["conv1_w"], (1, 1), "VALID",
        dimension_numbers=("NCHW", "OIHW", "NCHW"), precision=hi)
    y = jnp.maximum(y + p["conv1_b"][None, :, None, None], 0.0)
    y = jax.lax.reduce_window(y, -jnp.inf, jax.lax.max,
                              (1, 1, 2, 2), (1, 1, 2, 2), "VALID")
    y = jax.lax.conv_general_dilated(
        y, p["conv2_w"], (1, 1), "VALID",
        dimension_numbers=("NCHW", "OIHW", "NCHW"), precision=hi)
    y = jnp.maximum(y + p["conv2_b"][None, :, None, None], 0.0)
    y = jax.lax.reduce_window(y, -jnp.inf, jax.lax.max,
                              (1, 1, 2, 2), (1, 1, 2, 2), "VALID")
    y = y.reshape(y.shape[0], -1)
    y = jnp.maximum(jnp.dot(y, p["fc1_w"], precision=hi) + p["fc1_b"], 0.0)
    y = jnp.maximum(jnp.dot(y, p["fc2_w"], precision=hi) + p["fc2_b"], 0.0)
    return jnp.dot(y, p["fc3_w"], precision=hi) + p["fc3_b"]


if __name__ == "__main__":
    key = jax.random.PRNGKey(0)
    pkey, xkey = jax.random.split(key)
    params = init_params(pkey)
    kp = prepare_params(params)              # one-time repack for the kernels
    # fc1's 16*5*5 input implies 32x32 spatial input (CIFAR-like); batch = 2.
    x = jax.random.normal(xkey, (2, 3, 32, 32), dtype=jnp.float32)

    out = jax.block_until_ready(forward(kp, x))
    assert out.shape == (2, 10), out.shape
    assert bool(jnp.all(jnp.isfinite(out)))

    ref = np.asarray(reference_forward(params, x))
    np.testing.assert_allclose(np.asarray(out), ref, atol=2e-3, rtol=2e-3)
    print("KERNEL_OK")
</pallas_src>

<mosaic_0001>
module attributes {stable_mosaic.version = 11 : i64} {
  func.func @_conv_pool_kernel(%arg0: i32, %arg1: memref<1x4x196x128xf32, #tpu.memory_space<vmem>>, %arg2: memref<128x32xf32, #tpu.memory_space<vmem>>, %arg3: memref<1x32xf32, #tpu.memory_space<vmem>>, %arg4: memref<1x196x32xf32, #tpu.memory_space<vmem>>) attributes {dimension_semantics = [#tpu.dimension_semantics<parallel>], iteration_bounds = array<i64: 2>, scalar_prefetch = 0 : i64, scratch_operands = 0 : i64, tpu.core_type = #tpu.core_type<tc>, window_params = [{transform_indices = @transform_0, window_bounds = array<i64: 1, 4, 196, 128>}, {pipeline_mode = #tpu.pipeline_mode<synchronous>, transform_indices = @transform_1, window_bounds = array<i64: 128, 32>}, {pipeline_mode = #tpu.pipeline_mode<synchronous>, transform_indices = @transform_2, window_bounds = array<i64: 1, 32>}, {transform_indices = @transform_3, window_bounds = array<i64: 1, 196, 32>}]} {
    %c0 = arith.constant 0 : index
    %c0_0 = arith.constant 0 : index
    %0 = vector.load %arg2[%c0, %c0_0] : memref<128x32xf32, #tpu.memory_space<vmem>>, vector<128x32xf32>
    %c0_1 = arith.constant 0 : index
    %c0_2 = arith.constant 0 : index
    %c0_3 = arith.constant 0 : index
    %c0_4 = arith.constant 0 : index
    %1 = vector.load %arg1[%c0_1, %c0_2, %c0_3, %c0_4] : memref<1x4x196x128xf32, #tpu.memory_space<vmem>>, vector<1x1x196x128xf32>
    %2 = vector.shape_cast %1 : vector<1x1x196x128xf32> to vector<196x128xf32>
    %cst = arith.constant dense<0.000000e+00> : vector<196x32xf32>
    %3 = tpu.matmul %2, %0, %cst {dimension_numbers = #tpu.dot_dimension_numbers<[1], [0], [0], [1], [0, 0, 1, 1], [], []>} : vector<196x128xf32>, vector<128x32xf32>, vector<196x32xf32> -> vector<196x32xf32>
    %c0_5 = arith.constant 0 : index
    %c1 = arith.constant 1 : index
    %c0_6 = arith.constant 0 : index
    %c0_7 = arith.constant 0 : index
    %4 = vector.load %arg1[%c0_5, %c1, %c0_6, %c0_7] : memref<1x4x196x128xf32, #tpu.memory_space<vmem>>, vector<1x1x196x128xf32>
    %5 = vector.shape_cast %4 : vector<1x1x196x128xf32> to vector<196x128xf32>
    %cst_8 = arith.constant dense<0.000000e+00> : vector<196x32xf32>
    %6 = tpu.matmul %5, %0, %cst_8 {dimension_numbers = #tpu.dot_dimension_numbers<[1], [0], [0], [1], [0, 0, 1, 1], [], []>} : vector<196x128xf32>, vector<128x32xf32>, vector<196x32xf32> -> vector<196x32xf32>
    %7 = arith.maximumf %3, %6 : vector<196x32xf32>
    %c0_9 = arith.constant 0 : index
    %c2 = arith.constant 2 : index
    %c0_10 = arith.constant 0 : index
    %c0_11 = arith.constant 0 : index
    %8 = vector.load %arg1[%c0_9, %c2, %c0_10, %c0_11] : memref<1x4x196x128xf32, #tpu.memory_space<vmem>>, vector<1x1x196x128xf32>
    %9 = vector.shape_cast %8 : vector<1x1x196x128xf32> to vector<196x128xf32>
    %cst_12 = arith.constant dense<0.000000e+00> : vector<196x32xf32>
    %10 = tpu.matmul %9, %0, %cst_12 {dimension_numbers = #tpu.dot_dimension_numbers<[1], [0], [0], [1], [0, 0, 1, 1], [], []>} : vector<196x128xf32>, vector<128x32xf32>, vector<196x32xf32> -> vector<196x32xf32>
    %11 = arith.maximumf %7, %10 : vector<196x32xf32>
    %c0_13 = arith.constant 0 : index
    %c3 = arith.constant 3 : index
    %c0_14 = arith.constant 0 : index
    %c0_15 = arith.constant 0 : index
    %12 = vector.load %arg1[%c0_13, %c3, %c0_14, %c0_15] : memref<1x4x196x128xf32, #tpu.memory_space<vmem>>, vector<1x1x196x128xf32>
    %13 = vector.shape_cast %12 : vector<1x1x196x128xf32> to vector<196x128xf32>
    %cst_16 = arith.constant dense<0.000000e+00> : vector<196x32xf32>
    %14 = tpu.matmul %13, %0, %cst_16 {dimension_numbers = #tpu.dot_dimension_numbers<[1], [0], [0], [1], [0, 0, 1, 1], [], []>} : vector<196x128xf32>, vector<128x32xf32>, vector<196x32xf32> -> vector<196x32xf32>
    %15 = arith.maximumf %11, %14 : vector<196x32xf32>
    %c0_17 = arith.constant 0 : index
    %c0_18 = arith.constant 0 : index
    %16 = vector.load %arg3[%c0_17, %c0_18] : memref<1x32xf32, #tpu.memory_space<vmem>>, vector<1x32xf32>
    %17 = vector.broadcast %16 : vector<1x32xf32> to vector<196x32xf32>
    %18 = arith.addf %15, %17 : vector<196x32xf32>
    %cst_19 = arith.constant 0.000000e+00 : f32
    %19 = vector.broadcast %cst_19 : f32 to vector<196x32xf32>
    %20 = arith.maximumf %18, %19 : vector<196x32xf32>
    %c0_20 = arith.constant 0 : index
    %c0_21 = arith.constant 0 : index
    %c0_22 = arith.constant 0 : index
    %21 = vector.load %arg4[%c0_20, %c0_21, %c0_22] : memref<1x196x32xf32, #tpu.memory_space<vmem>>, vector<1x196x32xf32>
    %22 = vector.shape_cast %21 : vector<1x196x32xf32> to vector<196x32xf32>
    %23 = vector.shape_cast %20 : vector<196x32xf32> to vector<1x196x32xf32>
    tpu.vector_store %arg4[%c0_20, %c0_21, %c0_22], %23 {strides = array<i32>} : memref<1x196x32xf32, #tpu.memory_space<vmem>>, vector<1x196x32xf32>,
    return
  }
  func.func @transform_0(%arg0: i32) -> (i32, i32, i32, i32) {
    %c0_i32 = arith.constant 0 : i32
    %c0_i32_0 = arith.constant 0 : i32
    %c0_i32_1 = arith.constant 0 : i32
    %c0_i32_2 = arith.constant 0 : i32
    return %arg0, %c0_i32, %c0_i32_0, %c0_i32_1 : i32, i32, i32, i32
  }
  func.func @transform_1(%arg0: i32) -> (i32, i32) {
    %c0_i32 = arith.constant 0 : i32
    %c0_i32_0 = arith.constant 0 : i32
    %c0_i32_1 = arith.constant 0 : i32
    return %c0_i32, %c0_i32_0 : i32, i32
  }
  func.func @transform_2(%arg0: i32) -> (i32, i32) {
    %c0_i32 = arith.constant 0 : i32
    %c0_i32_0 = arith.constant 0 : i32
    %c0_i32_1 = arith.constant 0 : i32
    return %c0_i32, %c0_i32_0 : i32, i32
  }
  func.func @transform_3(%arg0: i32) -> (i32, i32, i32) {
    %c0_i32 = arith.constant 0 : i32
    %c0_i32_0 = arith.constant 0 : i32
    %c0_i32_1 = arith.constant 0 : i32
    return %arg0, %c0_i32, %c0_i32_0 : i32, i32, i32
  }
}

module attributes {stable_mosaic.version = 11 : i64} {
  func.func @_conv_pool_kernel(%arg0: i32, %arg1: memref<1x4x25x800xf32, #tpu.memory_space<vmem>>, %arg2: memref<800x16xf32, #tpu.memory_space<vmem>>, %arg3: memref<1x16xf32, #tpu.memory_space<vmem>>, %arg4: memref<1x25x16xf32, #tpu.memory_space<vmem>>) attributes {dimension_semantics = [#tpu.dimension_semantics<parallel>], iteration_bounds = array<i64: 2>, scalar_prefetch = 0 : i64, scratch_operands = 0 : i64, tpu.core_type = #tpu.core_type<tc>, window_params = [{transform_indices = @transform_0, window_bounds = array<i64: 1, 4, 25, 800>}, {pipeline_mode = #tpu.pipeline_mode<synchronous>, transform_indices = @transform_1, window_bounds = array<i64: 800, 16>}, {pipeline_mode = #tpu.pipeline_mode<synchronous>, transform_indices = @transform_2, window_bounds = array<i64: 1, 16>}, {transform_indices = @transform_3, window_bounds = array<i64: 1, 25, 16>}]} {
    %c0 = arith.constant 0 : index
    %c0_0 = arith.constant 0 : index
    %0 = vector.load %arg2[%c0, %c0_0] : memref<800x16xf32, #tpu.memory_space<vmem>>, vector<800x16xf32>
    %c0_1 = arith.constant 0 : index
    %c0_2 = arith.constant 0 : index
    %c0_3 = arith.constant 0 : index
    %c0_4 = arith.constant 0 : index
    %1 = vector.load %arg1[%c0_1, %c0_2, %c0_3, %c0_4] : memref<1x4x25x800xf32, #tpu.memory_space<vmem>>, vector<1x1x25x800xf32>
    %2 = vector.shape_cast %1 : vector<1x1x25x800xf32> to vector<25x800xf32>
    %cst = arith.constant dense<0.000000e+00> : vector<25x16xf32>
    %3 = tpu.matmul %2, %0, %cst {dimension_numbers = #tpu.dot_dimension_numbers<[1], [0], [0], [1], [0, 0, 1, 1], [], []>} : vector<25x800xf32>, vector<800x16xf32>, vector<25x16xf32> -> vector<25x16xf32>
    %c0_5 = arith.constant 0 : index
    %c1 = arith.constant 1 : index
    %c0_6 = arith.constant 0 : index
    %c0_7 = arith.constant 0 : index
    %4 = vector.load %arg1[%c0_5, %c1, %c0_6, %c0_7] : memref<1x4x25x800xf32, #tpu.memory_space<vmem>>, vector<1x1x25x800xf32>
    %5 = vector.shape_cast %4 : vector<1x1x25x800xf32> to vector<25x800xf32>
    %cst_8 = arith.constant dense<0.000000e+00> : vector<25x16xf32>
    %6 = tpu.matmul %5, %0, %cst_8 {dimension_numbers = #tpu.dot_dimension_numbers<[1], [0], [0], [1], [0, 0, 1, 1], [], []>} : vector<25x800xf32>, vector<800x16xf32>, vector<25x16xf32> -> vector<25x16xf32>
    %7 = arith.maximumf %3, %6 : vector<25x16xf32>
    %c0_9 = arith.constant 0 : index
    %c2 = arith.constant 2 : index
    %c0_10 = arith.constant 0 : index
    %c0_11 = arith.constant 0 : index
    %8 = vector.load %arg1[%c0_9, %c2, %c0_10, %c0_11] : memref<1x4x25x800xf32, #tpu.memory_space<vmem>>, vector<1x1x25x800xf32>
    %9 = vector.shape_cast %8 : vector<1x1x25x800xf32> to vector<25x800xf32>
    %cst_12 = arith.constant dense<0.000000e+00> : vector<25x16xf32>
    %10 = tpu.matmul %9, %0, %cst_12 {dimension_numbers = #tpu.dot_dimension_numbers<[1], [0], [0], [1], [0, 0, 1, 1], [], []>} : vector<25x800xf32>, vector<800x16xf32>, vector<25x16xf32> -> vector<25x16xf32>
    %11 = arith.maximumf %7, %10 : vector<25x16xf32>
    %c0_13 = arith.constant 0 : index
    %c3 = arith.constant 3 : index
    %c0_14 = arith.constant 0 : index
    %c0_15 = arith.constant 0 : index
    %12 = vector.load %arg1[%c0_13, %c3, %c0_14, %c0_15] : memref<1x4x25x800xf32, #tpu.memory_space<vmem>>, vector<1x1x25x800xf32>
    %13 = vector.shape_cast %12 : vector<1x1x25x800xf32> to vector<25x800xf32>
    %cst_16 = arith.constant dense<0.000000e+00> : vector<25x16xf32>
    %14 = tpu.matmul %13, %0, %cst_16 {dimension_numbers = #tpu.dot_dimension_numbers<[1], [0], [0], [1], [0, 0, 1, 1], [], []>} : vector<25x800xf32>, vector<800x16xf32>, vector<25x16xf32> -> vector<25x16xf32>
    %15 = arith.maximumf %11, %14 : vector<25x16xf32>
    %c0_17 = arith.constant 0 : index
    %c0_18 = arith.constant 0 : index
    %16 = vector.load %arg3[%c0_17, %c0_18] : memref<1x16xf32, #tpu.memory_space<vmem>>, vector<1x16xf32>
    %17 = vector.broadcast %16 : vector<1x16xf32> to vector<25x16xf32>
    %18 = arith.addf %15, %17 : vector<25x16xf32>
    %cst_19 = arith.constant 0.000000e+00 : f32
    %19 = vector.broadcast %cst_19 : f32 to vector<25x16xf32>
    %20 = arith.maximumf %18, %19 : vector<25x16xf32>
    %c0_20 = arith.constant 0 : index
    %c0_21 = arith.constant 0 : index
    %c0_22 = arith.constant 0 : index
    %21 = vector.load %arg4[%c0_20, %c0_21, %c0_22] : memref<1x25x16xf32, #tpu.memory_space<vmem>>, vector<1x25x16xf32>
    %22 = vector.shape_cast %21 : vector<1x25x16xf32> to vector<25x16xf32>
    %23 = vector.shape_cast %20 : vector<25x16xf32> to vector<1x25x16xf32>
    tpu.vector_store %arg4[%c0_20, %c0_21, %c0_22], %23 {strides = array<i32>} : memref<1x25x16xf32, #tpu.memory_space<vmem>>, vector<1x25x16xf32>,
    return
  }
  func.func @transform_0(%arg0: i32) -> (i32, i32, i32, i32) {
    %c0_i32 = arith.constant 0 : i32
    %c0_i32_0 = arith.constant 0 : i32
    %c0_i32_1 = arith.constant 0 : i32
    %c0_i32_2 = arith.constant 0 : i32
    return %arg0, %c0_i32, %c0_i32_0, %c0_i32_1 : i32, i32, i32, i32
  }
  func.func @transform_1(%arg0: i32) -> (i32, i32) {
    %c0_i32 = arith.constant 0 : i32
    %c0_i32_0 = arith.constant 0 : i32
    %c0_i32_1 = arith.constant 0 : i32
    return %c0_i32, %c0_i32_0 : i32, i32
  }
  func.func @transform_2(%arg0: i32) -> (i32, i32) {
    %c0_i32 = arith.constant 0 : i32
    %c0_i32_0 = arith.constant 0 : i32
    %c0_i32_1 = arith.constant 0 : i32
    return %c0_i32, %c0_i32_0 : i32, i32
  }
  func.func @transform_3(%arg0: i32) -> (i32, i32, i32) {
    %c0_i32 = arith.constant 0 : i32
    %c0_i32_0 = arith.constant 0 : i32
    %c0_i32_1 = arith.constant 0 : i32
    return %arg0, %c0_i32, %c0_i32_0 : i32, i32, i32
  }
}

module attributes {stable_mosaic.version = 11 : i64} {
  func.func @_fc_kernel(%arg0: memref<8x400xf32, #tpu.memory_space<vmem>>, %arg1: memref<400x64xf32, #tpu.memory_space<vmem>>, %arg2: memref<1x64xf32, #tpu.memory_space<vmem>>, %arg3: memref<64x32xf32, #tpu.memory_space<vmem>>, %arg4: memref<1x32xf32, #tpu.memory_space<vmem>>, %arg5: memref<32x128xf32, #tpu.memory_space<vmem>>, %arg6: memref<1x128xf32, #tpu.memory_space<vmem>>, %arg7: memref<8x128xf32, #tpu.memory_space<vmem>>) attributes {dimension_semantics = [], scalar_prefetch = 0 : i64, scratch_operands = 0 : i64, tpu.core_type = #tpu.core_type<tc>} {
    %c0 = arith.constant 0 : index
    %c0_0 = arith.constant 0 : index
    %0 = vector.load %arg0[%c0, %c0_0] : memref<8x400xf32, #tpu.memory_space<vmem>>, vector<8x400xf32>
    %c0_1 = arith.constant 0 : index
    %c0_2 = arith.constant 0 : index
    %1 = vector.load %arg1[%c0_1, %c0_2] : memref<400x64xf32, #tpu.memory_space<vmem>>, vector<400x64xf32>
    %cst = arith.constant dense<0.000000e+00> : vector<8x64xf32>
    %2 = tpu.matmul %0, %1, %cst {dimension_numbers = #tpu.dot_dimension_numbers<[1], [0], [0], [1], [0, 0, 1, 1], [], []>} : vector<8x400xf32>, vector<400x64xf32>, vector<8x64xf32> -> vector<8x64xf32>
    %c0_3 = arith.constant 0 : index
    %c0_4 = arith.constant 0 : index
    %3 = vector.load %arg2[%c0_3, %c0_4] : memref<1x64xf32, #tpu.memory_space<vmem>>, vector<1x64xf32>
    %4 = vector.broadcast %3 : vector<1x64xf32> to vector<8x64xf32>
    %5 = arith.addf %2, %4 : vector<8x64xf32>
    %cst_5 = arith.constant 0.000000e+00 : f32
    %6 = vector.broadcast %cst_5 : f32 to vector<8x64xf32>
    %7 = arith.maximumf %5, %6 : vector<8x64xf32>
    %c0_6 = arith.constant 0 : index
    %c0_7 = arith.constant 0 : index
    %8 = vector.load %arg3[%c0_6, %c0_7] : memref<64x32xf32, #tpu.memory_space<vmem>>, vector<64x32xf32>
    %cst_8 = arith.constant dense<0.000000e+00> : vector<8x32xf32>
    %9 = tpu.matmul %7, %8, %cst_8 {dimension_numbers = #tpu.dot_dimension_numbers<[1], [0], [0], [1], [0, 0, 1, 1], [], []>} : vector<8x64xf32>, vector<64x32xf32>, vector<8x32xf32> -> vector<8x32xf32>
    %c0_9 = arith.constant 0 : index
    %c0_10 = arith.constant 0 : index
    %10 = vector.load %arg4[%c0_9, %c0_10] : memref<1x32xf32, #tpu.memory_space<vmem>>, vector<1x32xf32>
    %11 = vector.broadcast %10 : vector<1x32xf32> to vector<8x32xf32>
    %12 = arith.addf %9, %11 : vector<8x32xf32>
    %cst_11 = arith.constant 0.000000e+00 : f32
    %13 = vector.broadcast %cst_11 : f32 to vector<8x32xf32>
    %14 = arith.maximumf %12, %13 : vector<8x32xf32>
    %c0_12 = arith.constant 0 : index
    %c0_13 = arith.constant 0 : index
    %15 = vector.load %arg5[%c0_12, %c0_13] : memref<32x128xf32, #tpu.memory_space<vmem>>, vector<32x128xf32>
    %cst_14 = arith.constant dense<0.000000e+00> : vector<8x128xf32>
    %16 = tpu.matmul %14, %15, %cst_14 {dimension_numbers = #tpu.dot_dimension_numbers<[1], [0], [0], [1], [0, 0, 1, 1], [], []>} : vector<8x32xf32>, vector<32x128xf32>, vector<8x128xf32> -> vector<8x128xf32>
    %c0_15 = arith.constant 0 : index
    %c0_16 = arith.constant 0 : index
    %17 = vector.load %arg6[%c0_15, %c0_16] : memref<1x128xf32, #tpu.memory_space<vmem>>, vector<1x128xf32>
    %18 = vector.broadcast %17 : vector<1x128xf32> to vector<8x128xf32>
    %19 = arith.addf %16, %18 : vector<8x128xf32>
    %c0_17 = arith.constant 0 : index
    %c0_18 = arith.constant 0 : index
    %20 = vector.load %arg7[%c0_17, %c0_18] : memref<8x128xf32, #tpu.memory_space<vmem>>, vector<8x128xf32>
    tpu.vector_store %arg7[%c0_17, %c0_18], %19 {strides = array<i32>} : memref<8x128xf32, #tpu.memory_space<vmem>>, vector<8x128xf32>,
    return
  }
}

</mosaic_0001>

<llo_original>
// kernel: forward.3
$region0: #{forward.3}
  #allocation0 [shape = 'u32[]', space=smem, size = 0x4, offset = 0x4, fixed_abs, tag = 'smem constant byte address 0x4 - core index']
  #allocation1 [shape = 'u32[72,128]{1,0:T(1,128)}', space=vmem, size = 0x9000, scoped, tag = 'internal scratch']
  %s0 = inlined_call_operand.vmem [shape: f32[2,4,196,128], index: 0, kind: input, shape index: {}]
  %s1 = inlined_call_operand.vmem [shape: f32[128,32], index: 1, kind: input, shape index: {}]
  %s2 = inlined_call_operand.vmem [shape: f32[1,32], index: 2, kind: input, shape index: {}]
  %s3 = inlined_call_operand.vmem [shape: f32[2,196,32], index: 3, kind: output, shape index: {}]
  %s4 = sld [smem:[#allocation0]]
  $region45: #{forward.3} parent=0
    _
  %s6 = ssub.s32 1, %s4
  %s7 = scalar_select 0, %s6, %s4
  loop: start=0, step=1, limit=4
  $region2: #{forward.3} parent=0 // loop_pre_header
    _
  $region3: #{forward.3} parent=0 // loop_header
    %s9 = sphi 0, %s13
    %p10 = scmp.ge.s32.totalorder %s9, 4
    %s19 = sphi 0, %s21
    %s22 = sphi 0, %s19
    %s23 = sphi 0, %s22
    %s39 = sphi 0, %s23
    %s43 = sphi 0, %s43
    %s45 = sphi 0, %s43
    %s46 = sphi 0, %s45
    %s60 = sphi 0, %s46
    %s64 = sphi 0, %s64
    %s66 = sphi 0, %s64
    %s67 = sphi 0, %s66
    %s81 = sphi 0, %s67
    %s87 = sphi 0, %s89
    %s90 = sphi 0, %s87
    %s91 = sphi 0, %s90
    %s107 = sphi 0, %s91
  $region4: #{forward.3} parent=0 // loop_header_branch
    %12 = sbr.rel (%p10) target = $region8
  $region5: #{forward.3} parent=0 // loop_body
    %s14 = ssub.s32 %s9, 1
    %s15 = ssub.s32 %s9, 2
    %s16 = sadd.s32 %s9, 1
    %s17 = ssub.s32 %s9, %s16
    %p18 = scmp.eq.s32.totalorder %s17, 0
    %s20 = sadd.s32 %s19, 1
    %s21 = scalar_select %p18, %s19, %s20
    %p24 = pneg %p18
    %p25 = scmp.eq.s32.totalorder %s9, 1
    %p26 = por %p24, %p25
    %p27 = scmp.ne.s32.totalorder %s19, %s22
    %p28 = scmp.eq.s32.totalorder %s9, 0
    %p29 = por %p27, %p28
    %p30 = scmp.ne.s32.totalorder %s19, %s22
    %p31 = scmp.eq.s32.totalorder %s14, 1
    %p32 = por %p30, %p31
    %p33 = scmp.ne.s32.totalorder %s22, %s23
    %p34 = scmp.eq.s32.totalorder %s14, 0
    %p35 = por %p33, %p34
    %p36 = scmp.ne.s32.totalorder %s22, %s23
    %p37 = scmp.eq.s32.totalorder %s15, 1
    %p38 = por %p36, %p37
    %p40 = scmp.ne.s32.totalorder %s23, %s39
    %p41 = scmp.eq.s32.totalorder %s15, 0
    %p42 = por %p40, %p41
    %s44 = sadd.s32 %s43, 1
    %p47 = scmp.eq.s32.totalorder %s9, 1
    %p48 = scmp.ne.s32.totalorder %s43, %s45
    %p49 = scmp.eq.s32.totalorder %s9, 0
    %p50 = por %p48, %p49
    %p51 = scmp.ne.s32.totalorder %s43, %s45
    %p52 = scmp.eq.s32.totalorder %s14, 1
    %p53 = por %p51, %p52
    %p54 = scmp.ne.s32.totalorder %s45, %s46
    %p55 = scmp.eq.s32.totalorder %s14, 0
    %p56 = por %p54, %p55
    %p57 = scmp.ne.s32.totalorder %s45, %s46
    %p58 = scmp.eq.s32.totalorder %s15, 1
    %p59 = por %p57, %p58
    %p61 = scmp.ne.s32.totalorder %s46, %s60
    %p62 = scmp.eq.s32.totalorder %s15, 0
    %p63 = por %p61, %p62
    %s65 = sadd.s32 %s64, 1
    %p68 = scmp.eq.s32.totalorder %s9, 1
    %p69 = scmp.ne.s32.totalorder %s64, %s66
    %p70 = scmp.eq.s32.totalorder %s9, 0
    %p71 = por %p69, %p70
    %p72 = scmp.ne.s32.totalorder %s64, %s66
    %p73 = scmp.eq.s32.totalorder %s14, 1
    %p74 = por %p72, %p73
    %p75 = scmp.ne.s32.totalorder %s66, %s67
    %p76 = scmp.eq.s32.totalorder %s14, 0
    %p77 = por %p75, %p76
    %p78 = scmp.ne.s32.totalorder %s66, %s67
    %p79 = scmp.eq.s32.totalorder %s15, 1
    %p80 = por %p78, %p79
    %p82 = scmp.ne.s32.totalorder %s67, %s81
    %p83 = scmp.eq.s32.totalorder %s15, 0
    %p84 = por %p82, %p83
    %s85 = ssub.s32 %s9, %s16
    %p86 = scmp.eq.s32.totalorder %s85, 0
    %s88 = sadd.s32 %s87, 1
    %s89 = scalar_select %p86, %s87, %s88
    %p92 = pneg %p86
    %p93 = scmp.eq.s32.totalorder %s9, 1
    %p94 = por %p92, %p93
    %p95 = scmp.ne.s32.totalorder %s87, %s90
    %p96 = scmp.eq.s32.totalorder %s9, 0
    %p97 = por %p95, %p96
    %p98 = scmp.ne.s32.totalorder %s87, %s90
    %p99 = scmp.eq.s32.totalorder %s14, 1
    %p100 = por %p98, %p99
    %p101 = scmp.ne.s32.totalorder %s90, %s91
    %p102 = scmp.eq.s32.totalorder %s14, 0
    %p103 = por %p101, %p102
    %p104 = scmp.ne.s32.totalorder %s90, %s91
    %p105 = scmp.eq.s32.totalorder %s15, 1
    %p106 = por %p104, %p105
    %p108 = scmp.ne.s32.totalorder %s91, %s107
    %p109 = scmp.eq.s32.totalorder %s15, 0
    %p110 = por %p108, %p109
    %p111 = scmp.le.s32.totalorder 1, %s9
    %p112 = scmp.lt.s32.totalorder %s9, 3
    %p113 = pnand %p111, %p112
    %p114 = pneg %p113
    // Predicated region
    $region9: #{forward.3} parent=5 // pred_check
      _
    $region10: #{forward.3} parent=5 // pred_check_branch
      %116 = sbr.rel (%p113) target = $region12
    $region11: #{forward.3} parent=5 // pred_region
      %s117 = ssub.s32 %s9, 1
      // Predicated region
      $region13: #{forward.3} parent=11 // pred_check
        %p118 = pneg %p56
      $region14: #{forward.3} parent=11 // pred_check_branch
        %120 = sbr.rel (%p118) target = $region16
      $region15: #{forward.3} parent=11 // pred_region
        _
      $region16: #{forward.3} parent=11 // pred_fallthru
        _
      // Predicated region
      $region17: #{forward.3} parent=11 // pred_check
        %p121 = pneg %p77
      $region18: #{forward.3} parent=11 // pred_check_branch
        %123 = sbr.rel (%p121) target = $region20
      $region19: #{forward.3} parent=11 // pred_region
        _
      $region20: #{forward.3} parent=11 // pred_fallthru
        _
    $region12: #{forward.3} parent=5 // pred_fallthru
      _
    %p124 = scmp.lt.s32.totalorder %s9, 2
    // Predicated region
    $region21: #{forward.3} parent=5 // pred_check
      %p125 = pneg %p124
    $region22: #{forward.3} parent=5 // pred_check_branch
      %127 = sbr.rel (%p125) target = $region24
    $region23: #{forward.3} parent=5 // pred_region
      // Predicated region
      $region25: #{forward.3} parent=23 // pred_check
        %p128 = pneg %p29
      $region26: #{forward.3} parent=23 // pred_check_branch
        %130 = sbr.rel (%p128) target = $region28
      $region27: #{forward.3} parent=23 // pred_region
        %p131 = scmp.lt.s32.totalorder %s9, 1
        %s132 = scalar_select %p131, %s9, 1
        %s133 = smul.addr %s132, 100
        %s134 = smul.addr %s133, 8
        %s135 = scalar_lea.vmem %s0, %s134
      $region28: #{forward.3} parent=23 // pred_fallthru
        _
    $region24: #{forward.3} parent=5 // pred_fallthru
      _
    %p136 = scmp.le.s32.totalorder 1, %s9
    %p137 = scmp.lt.s32.totalorder %s9, 3
    %p138 = pnand %p136, %p137
    %p139 = pneg %p138
    // Predicated region
    $region29: #{forward.3} parent=5 // pred_check
      _
    $region30: #{forward.3} parent=5 // pred_check_branch
      %141 = sbr.rel (%p138) target = $region32
    $region31: #{forward.3} parent=5 // pred_region
      %s142 = ssub.s32 %s9, 1
      %p143 = scmp.lt.s32.totalorder %s14, 1
      %s144 = scalar_select %p143, %s14, 1
      %s145 = smul.addr %s144, 100
      %s146 = smul.addr %s145, 8
      %s147 = scalar_lea.vmem %s0, %s146
      %p148 = pneg %p35
      %p149 = pneg %p32
      %p150 = pneg %p56
      %p151 = pneg %p53
      %p152 = pneg %p77
      %p153 = pneg %p74
      %p154 = pneg %p103
      %p155 = pneg %p100
      %p156 = scmp.lt.s32.totalorder %s14, 1
      %s157 = scalar_select %p156, %s14, 1
      %s158 = smul.addr %s157, 25
      %s159 = smul.addr %s158, 8
      %s160 = scalar_lea.vmem %s3, %s159
      %p161 = scmp.lt.s32.totalorder %s14, 1
      %s162 = scalar_select %p161, %s14, 1
      %s163 = smul.addr %s162, 100
      %s164 = smul.addr %s163, 8
      %s165 = scalar_lea.vmem %s0, %s164
      %p166 = scmp.lt.s32.totalorder %s14, 1
      %s167 = scalar_select %p166, %s14, 1
      %s168 = smul.addr %s167, 25
      %s169 = smul.addr %s168, 8
      %s170 = scalar_lea.vmem %s3, %s169
      %v171 = vld [vmem:[%s1] sm:$0xff]
      %v172 = vld [vmem:[%s1 + $0x8] sm:$0xff]
      %v173 = vld [vmem:[%s1 + $0x10] sm:$0xff]
      %v174 = vld [vmem:[%s1 + $0x18] sm:$0xff]
      %v175 = vld [vmem:[%s1 + $0x20] sm:$0xff]
      %v176 = vld [vmem:[%s1 + $0x28] sm:$0xff]
      %v177 = vld [vmem:[%s1 + $0x30] sm:$0xff]
      %v178 = vld [vmem:[%s1 + $0x38] sm:$0xff]
      %v179 = vld [vmem:[%s1 + $0x40] sm:$0xff]
      %v180 = vld [vmem:[%s1 + $0x48] sm:$0xff]
      %v181 = vld [vmem:[%s1 + $0x50] sm:$0xff]
      %v182 = vld [vmem:[%s1 + $0x58] sm:$0xff]
      %v183 = vld [vmem:[%s1 + $0x60] sm:$0xff]
      %v184 = vld [vmem:[%s1 + $0x68] sm:$0xff]
      %v185 = vld [vmem:[%s1 + $0x70] sm:$0xff]
      %v186 = vld [vmem:[%s1 + $0x78] sm:$0xff]
      %v187 = vld [vmem:[%s165] sm:$0xff]
      %v188 = vld [vmem:[%s165 + $0x8] sm:$0xff]
      %v189 = vld [vmem:[%s165 + $0x10] sm:$0xff]
      %v190 = vld [vmem:[%s165 + $0x18] sm:$0xff]
      %v191 = vld [vmem:[%s165 + $0x20] sm:$0xff]
      %v192 = vld [vmem:[%s165 + $0x28] sm:$0xff]
      %v193 = vld [vmem:[%s165 + $0x30] sm:$0xff]
      %v194 = vld [vmem:[%s165 + $0x38] sm:$0xff]
      %v195 = vld [vmem:[%s165 + $0x40] sm:$0xff]
      %v196 = vld [vmem:[%s165 + $0x48] sm:$0xff]
      %v197 = vld [vmem:[%s165 + $0x50] sm:$0xff]
      %v198 = vld [vmem:[%s165 + $0x58] sm:$0xff]
      %v199 = vld [vmem:[%s165 + $0x60] sm:$0xff]
      %v200 = vld [vmem:[%s165 + $0x68] sm:$0xff]
      %v201 = vld [vmem:[%s165 + $0x70] sm:$0xff]
      %v202 = vld [vmem:[%s165 + $0x78] sm:$0xff]
      %v203 = vld [vmem:[%s165 + $0x80] sm:$0xff]
      %v204 = vld [vmem:[%s165 + $0x88] sm:$0xff]
      %v205 = vld [vmem:[%s165 + $0x90] sm:$0xff]
      %v206 = vld [vmem:[%s165 + $0x98] sm:$0xff]
      %v207 = vld [vmem:[%s165 + $0xa0] sm:$0xff]
      %v208 = vld [vmem:[%s165 + $0xa8] sm:$0xff]
      %v209 = vld [vmem:[%s165 + $0xb0] sm:$0xff]
      %v210 = vld [vmem:[%s165 + $0xb8] sm:$0xff]
      %v211 = vld [vmem:[%s165 + $0xc0] sm:$0xf]
      %212 = vmatpush.msra.mxu0 %v186
      %213 = vmatpush.msra.mxu0 %v185
      %214 = vmatpush.msra.mxu0 %v184
      %215 = vmatpush.msra.mxu0 %v183
      %216 = vmatpush.msra.mxu0 %v182
      %217 = vmatpush.msra.mxu0 %v181
      %218 = vmatpush.msra.mxu0 %v180
      %219 = vmatpush.msra.mxu0 %v179
      %220 = vmatpush.msra.mxu0 %v178
      %221 = vmatpush.msra.mxu0 %v177
      %222 = vmatpush.msra.mxu0 %v176
      %223 = vmatpush.msra.mxu0 %v175
      %224 = vmatpush.msra.mxu0 %v174
      %225 = vmatpush.msra.mxu0 %v173
      %226 = vmatpush.msra.mxu0 %v172
      %227 = vmatpush.msra.mxu0 %v171
      %228 = vmatmul.f32.gmra.mxu0 %v187
      %v229 = vpop.f32.mrf.mxu0
      %v230 = vadd.f32 0.0, %v229
      %231 = vmatmul.f32.gmra.mxu0 %v188
      %v232 = vpop.f32.mrf.mxu0
      %v233 = vadd.f32 0.0, %v232
      %234 = vmatmul.f32.gmra.mxu0 %v189
      %v235 = vpop.f32.mrf.mxu0
      %v236 = vadd.f32 0.0, %v235
      %237 = vmatmul.f32.gmra.mxu0 %v190
      %v238 = vpop.f32.mrf.mxu0
      %v239 = vadd.f32 0.0, %v238
      %240 = vmatmul.f32.gmra.mxu0 %v191
      %v241 = vpop.f32.mrf.mxu0
      %v242 = vadd.f32 0.0, %v241
      %243 = vmatmul.f32.gmra.mxu0 %v192
      %v244 = vpop.f32.mrf.mxu0
      %v245 = vadd.f32 0.0, %v244
      %246 = vmatmul.f32.gmra.mxu0 %v193
      %v247 = vpop.f32.mrf.mxu0
      %v248 = vadd.f32 0.0, %v247
      %249 = vmatmul.f32.gmra.mxu0 %v194
      %v250 = vpop.f32.mrf.mxu0
      %v251 = vadd.f32 0.0, %v250
      %252 = vmatmul.f32.gmra.mxu0 %v195
      %v253 = vpop.f32.mrf.mxu0
      %v254 = vadd.f32 0.0, %v253
      %255 = vmatmul.f32.gmra.mxu0 %v196
      %v256 = vpop.f32.mrf.mxu0
      %v257 = vadd.f32 0.0, %v256
      %258 = vmatmul.f32.gmra.mxu0 %v197
      %v259 = vpop.f32.mrf.mxu0
      %v260 = vadd.f32 0.0, %v259
      %261 = vmatmul.f32.gmra.mxu0 %v198
      %v262 = vpop.f32.mrf.mxu0
      %v263 = vadd.f32 0.0, %v262
      %264 = vmatmul.f32.gmra.mxu0 %v199
      %v265 = vpop.f32.mrf.mxu0
      %v266 = vadd.f32 0.0, %v265
      %267 = vmatmul.f32.gmra.mxu0 %v200
      %v268 = vpop.f32.mrf.mxu0
      %v269 = vadd.f32 0.0, %v268
      %270 = vmatmul.f32.gmra.mxu0 %v201
      %v271 = vpop.f32.mrf.mxu0
      %v272 = vadd.f32 0.0, %v271
      %273 = vmatmul.f32.gmra.mxu0 %v202
      %v274 = vpop.f32.mrf.mxu0
      %v275 = vadd.f32 0.0, %v274
      %276 = vmatmul.f32.gmra.mxu0 %v203
      %v277 = vpop.f32.mrf.mxu0
      %v278 = vadd.f32 0.0, %v277
      %279 = vmatmul.f32.gmra.mxu0 %v204
      %v280 = vpop.f32.mrf.mxu0
      %v281 = vadd.f32 0.0, %v280
      %282 = vmatmul.f32.gmra.mxu0 %v205
      %v283 = vpop.f32.mrf.mxu0
      %v284 = vadd.f32 0.0, %v283
      %285 = vmatmul.f32.gmra.mxu0 %v206
      %v286 = vpop.f32.mrf.mxu0
      %v287 = vadd.f32 0.0, %v286
      %288 = vmatmul.f32.gmra.mxu0 %v207
      %v289 = vpop.f32.mrf.mxu0
      %v290 = vadd.f32 0.0, %v289
      %291 = vmatmul.f32.gmra.mxu0 %v208
      %v292 = vpop.f32.mrf.mxu0
      %v293 = vadd.f32 0.0, %v292
      %294 = vmatmul.f32.gmra.mxu0 %v209
      %v295 = vpop.f32.mrf.mxu0
      %v296 = vadd.f32 0.0, %v295
      %297 = vmatmul.f32.gmra.mxu0 %v210
      %v298 = vpop.f32.mrf.mxu0
      %v299 = vadd.f32 0.0, %v298
      %300 = vmatmul.f32.gmra.mxu0 %v211
      %v301 = vpop.f32.mrf.mxu0
      %v302 = vadd.f32 0.0, %v301
      %303 = vdwg.mxu0
      %s304 = scalar_lea.vmem %s165, 200
      %v305 = vld [vmem:[%s304] sm:$0xff]
      %v306 = vld [vmem:[%s304 + $0x8] sm:$0xff]
      %v307 = vld [vmem:[%s304 + $0x10] sm:$0xff]
      %v308 = vld [vmem:[%s304 + $0x18] sm:$0xff]
      %v309 = vld [vmem:[%s304 + $0x20] sm:$0xff]
      %v310 = vld [vmem:[%s304 + $0x28] sm:$0xff]
      %v311 = vld [vmem:[%s304 + $0x30] sm:$0xff]
      %v312 = vld [vmem:[%s304 + $0x38] sm:$0xff]
      %v313 = vld [vmem:[%s304 + $0x40] sm:$0xff]
      %v314 = vld [vmem:[%s304 + $0x48] sm:$0xff]
      %v315 = vld [vmem:[%s304 + $0x50] sm:$0xff]
      %v316 = vld [vmem:[%s304 + $0x58] sm:$0xff]
      %v317 = vld [vmem:[%s304 + $0x60] sm:$0xff]
      %v318 = vld [vmem:[%s304 + $0x68] sm:$0xff]
      %v319 = vld [vmem:[%s304 + $0x70] sm:$0xff]
      %v320 = vld [vmem:[%s304 + $0x78] sm:$0xff]
      %v321 = vld [vmem:[%s304 + $0x80] sm:$0xff]
      %v322 = vld [vmem:[%s304 + $0x88] sm:$0xff]
      %v323 = vld [vmem:[%s304 + $0x90] sm:$0xff]
      %v324 = vld [vmem:[%s304 + $0x98] sm:$0xff]
      %v325 = vld [vmem:[%s304 + $0xa0] sm:$0xff]
      %v326 = vld [vmem:[%s304 + $0xa8] sm:$0xff]
      %v327 = vld [vmem:[%s304 + $0xb0] sm:$0xff]
      %v328 = vld [vmem:[%s304 + $0xb8] sm:$0xff]
      %v329 = vld [vmem:[%s304 + $0xc0] sm:$0xf]
      %330 = vmatpush.msra.mxu0 %v186
      %331 = vmatpush.msra.mxu0 %v185
      %332 = vmatpush.msra.mxu0 %v184
      %333 = vmatpush.msra.mxu0 %v183
      %334 = vmatpush.msra.mxu0 %v182
      %335 = vmatpush.msra.mxu0 %v181
      %336 = vmatpush.msra.mxu0 %v180
      %337 = vmatpush.msra.mxu0 %v179
      %338 = vmatpush.msra.mxu0 %v178
      %339 = vmatpush.msra.mxu0 %v177
      %340 = vmatpush.msra.mxu0 %v176
      %341 = vmatpush.msra.mxu0 %v175
      %342 = vmatpush.msra.mxu0 %v174
      %343 = vmatpush.msra.mxu0 %v173
      %344 = vmatpush.msra.mxu0 %v172
      %345 = vmatpush.msra.mxu0 %v171
      %346 = vmatmul.f32.gmra.mxu0 %v305
      %v347 = vpop.f32.mrf.mxu0
      %v348 = vadd.f32 0.0, %v347
      %349 = vmatmul.f32.gmra.mxu0 %v306
      %v350 = vpop.f32.mrf.mxu0
      %v351 = vadd.f32 0.0, %v350
      %352 = vmatmul.f32.gmra.mxu0 %v307
      %v353 = vpop.f32.mrf.mxu0
      %v354 = vadd.f32 0.0, %v353
      %355 = vmatmul.f32.gmra.mxu0 %v308
      %v356 = vpop.f32.mrf.mxu0
      %v357 = vadd.f32 0.0, %v356
      %358 = vmatmul.f32.gmra.mxu0 %v309
      %v359 = vpop.f32.mrf.mxu0
      %v360 = vadd.f32 0.0, %v359
      %361 = vmatmul.f32.gmra.mxu0 %v310
      %v362 = vpop.f32.mrf.mxu0
      %v363 = vadd.f32 0.0, %v362
      %364 = vmatmul.f32.gmra.mxu0 %v311
      %v365 = vpop.f32.mrf.mxu0
      %v366 = vadd.f32 0.0, %v365
      %367 = vmatmul.f32.gmra.mxu0 %v312
      %v368 = vpop.f32.mrf.mxu0
      %v369 = vadd.f32 0.0, %v368
      %370 = vmatmul.f32.gmra.mxu0 %v313
      %v371 = vpop.f32.mrf.mxu0
      %v372 = vadd.f32 0.0, %v371
      %373 = vmatmul.f32.gmra.mxu0 %v314
      %v374 = vpop.f32.mrf.mxu0
      %v375 = vadd.f32 0.0, %v374
      %376 = vmatmul.f32.gmra.mxu0 %v315
      %v377 = vpop.f32.mrf.mxu0
      %v378 = vadd.f32 0.0, %v377
      %379 = vmatmul.f32.gmra.mxu0 %v316
      %v380 = vpop.f32.mrf.mxu0
      %v381 = vadd.f32 0.0, %v380
      %382 = vmatmul.f32.gmra.mxu0 %v317
      %v383 = vpop.f32.mrf.mxu0
      %v384 = vadd.f32 0.0, %v383
      %385 = vmatmul.f32.gmra.mxu0 %v318
      %v386 = vpop.f32.mrf.mxu0
      %v387 = vadd.f32 0.0, %v386
      %388 = vmatmul.f32.gmra.mxu0 %v319
      %v389 = vpop.f32.mrf.mxu0
      %v390 = vadd.f32 0.0, %v389
      %391 = vmatmul.f32.gmra.mxu0 %v320
      %v392 = vpop.f32.mrf.mxu0
      %v393 = vadd.f32 0.0, %v392
      %394 = vmatmul.f32.gmra.mxu0 %v321
      %v395 = vpop.f32.mrf.mxu0
      %v396 = vadd.f32 0.0, %v395
      %397 = vmatmul.f32.gmra.mxu0 %v322
      %v398 = vpop.f32.mrf.mxu0
      %v399 = vadd.f32 0.0, %v398
      %400 = vmatmul.f32.gmra.mxu0 %v323
      %v401 = vpop.f32.mrf.mxu0
      %v402 = vadd.f32 0.0, %v401
      %403 = vmatmul.f32.gmra.mxu0 %v324
      %v404 = vpop.f32.mrf.mxu0
      %v405 = vadd.f32 0.0, %v404
      %406 = vmatmul.f32.gmra.mxu0 %v325
      %v407 = vpop.f32.mrf.mxu0
      %v408 = vadd.f32 0.0, %v407
      %409 = vmatmul.f32.gmra.mxu0 %v326
      %v410 = vpop.f32.mrf.mxu0
      %v411 = vadd.f32 0.0, %v410
      %412 = vmatmul.f32.gmra.mxu0 %v327
      %v413 = vpop.f32.mrf.mxu0
      %v414 = vadd.f32 0.0, %v413
      %415 = vmatmul.f32.gmra.mxu0 %v328
      %v416 = vpop.f32.mrf.mxu0
      %v417 = vadd.f32 0.0, %v416
      %418 = vmatmul.f32.gmra.mxu0 %v329
      %v419 = vpop.f32.mrf.mxu0
      %v420 = vadd.f32 0.0, %v419
      %421 = vdwg.mxu0
      %v422 = vmax.f32 %v230, %v348
      %v423 = vmax.f32 %v233, %v351
      %v424 = vmax.f32 %v236, %v354
      %v425 = vmax.f32 %v239, %v357
      %v426 = vmax.f32 %v242, %v360
      %v427 = vmax.f32 %v245, %v363
      %v428 = vmax.f32 %v248, %v366
      %v429 = vmax.f32 %v251, %v369
      %v430 = vmax.f32 %v254, %v372
      %v431 = vmax.f32 %v257, %v375
      %v432 = vmax.f32 %v260, %v378
      %v433 = vmax.f32 %v263, %v381
      %v434 = vmax.f32 %v266, %v384
      %v435 = vmax.f32 %v269, %v387
      %v436 = vmax.f32 %v272, %v390
      %v437 = vmax.f32 %v275, %v393
      %v438 = vmax.f32 %v278, %v396
      %v439 = vmax.f32 %v281, %v399
      %v440 = vmax.f32 %v284, %v402
      %v441 = vmax.f32 %v287, %v405
      %v442 = vmax.f32 %v290, %v408
      %v443 = vmax.f32 %v293, %v411
      %v444 = vmax.f32 %v296, %v414
      %v445 = vmax.f32 %v299, %v417
      %v446 = vmax.f32 %v302, %v420
      %s447 = scalar_lea.vmem %s165, 400
      %v448 = vld [vmem:[%s447] sm:$0xff]
      %v449 = vld [vmem:[%s447 + $0x8] sm:$0xff]
      %v450 = vld [vmem:[%s447 + $0x10] sm:$0xff]
      %v451 = vld [vmem:[%s447 + $0x18] sm:$0xff]
      %v452 = vld [vmem:[%s447 + $0x20] sm:$0xff]
      %v453 = vld [vmem:[%s447 + $0x28] sm:$0xff]
      %v454 = vld [vmem:[%s447 + $0x30] sm:$0xff]
      %v455 = vld [vmem:[%s447 + $0x38] sm:$0xff]
      %v456 = vld [vmem:[%s447 + $0x40] sm:$0xff]
      %v457 = vld [vmem:[%s447 + $0x48] sm:$0xff]
      %v458 = vld [vmem:[%s447 + $0x50] sm:$0xff]
      %v459 = vld [vmem:[%s447 + $0x58] sm:$0xff]
      %v460 = vld [vmem:[%s447 + $0x60] sm:$0xff]
      %v461 = vld [vmem:[%s447 + $0x68] sm:$0xff]
      %v462 = vld [vmem:[%s447 + $0x70] sm:$0xff]
      %v463 = vld [vmem:[%s447 + $0x78] sm:$0xff]
      %v464 = vld [vmem:[%s447 + $0x80] sm:$0xff]
      %v465 = vld [vmem:[%s447 + $0x88] sm:$0xff]
      %v466 = vld [vmem:[%s447 + $0x90] sm:$0xff]
      %v467 = vld [vmem:[%s447 + $0x98] sm:$0xff]
      %v468 = vld [vmem:[%s447 + $0xa0] sm:$0xff]
      %v469 = vld [vmem:[%s447 + $0xa8] sm:$0xff]
      %v470 = vld [vmem:[%s447 + $0xb0] sm:$0xff]
      %v471 = vld [vmem:[%s447 + $0xb8] sm:$0xff]
      %v472 = vld [vmem:[%s447 + $0xc0] sm:$0xf]
      %473 = vmatpush.msra.mxu0 %v186
      %474 = vmatpush.msra.mxu0 %v185
      %475 = vmatpush.msra.mxu0 %v184
      %476 = vmatpush.msra.mxu0 %v183
      %477 = vmatpush.msra.mxu0 %v182
      %478 = vmatpush.msra.mxu0 %v181
      %479 = vmatpush.msra.mxu0 %v180
      %480 = vmatpush.msra.mxu0 %v179
      %481 = vmatpush.msra.mxu0 %v178
      %482 = vmatpush.msra.mxu0 %v177
      %483 = vmatpush.msra.mxu0 %v176
      %484 = vmatpush.msra.mxu0 %v175
      %485 = vmatpush.msra.mxu0 %v174
      %486 = vmatpush.msra.mxu0 %v173
      %487 = vmatpush.msra.mxu0 %v172
      %488 = vmatpush.msra.mxu0 %v171
      %489 = vmatmul.f32.gmra.mxu0 %v448
      %v490 = vpop.f32.mrf.mxu0
      %v491 = vadd.f32 0.0, %v490
      %492 = vmatmul.f32.gmra.mxu0 %v449
      %v493 = vpop.f32.mrf.mxu0
      %v494 = vadd.f32 0.0, %v493
      %495 = vmatmul.f32.gmra.mxu0 %v450
      %v496 = vpop.f32.mrf.mxu0
      %v497 = vadd.f32 0.0, %v496
      %498 = vmatmul.f32.gmra.mxu0 %v451
      %v499 = vpop.f32.mrf.mxu0
      %v500 = vadd.f32 0.0, %v499
      %501 = vmatmul.f32.gmra.mxu0 %v452
      %v502 = vpop.f32.mrf.mxu0
      %v503 = vadd.f32 0.0, %v502
      %504 = vmatmul.f32.gmra.mxu0 %v453
      %v505 = vpop.f32.mrf.mxu0
      %v506 = vadd.f32 0.0, %v505
      %507 = vmatmul.f32.gmra.mxu0 %v454
      %v508 = vpop.f32.mrf.mxu0
      %v509 = vadd.f32 0.0, %v508
      %510 = vmatmul.f32.gmra.mxu0 %v455
      %v511 = vpop.f32.mrf.mxu0
      %v512 = vadd.f32 0.0, %v511
      %513 = vmatmul.f32.gmra.mxu0 %v456
      %v514 = vpop.f32.mrf.mxu0
      %v515 = vadd.f32 0.0, %v514
      %516 = vmatmul.f32.gmra.mxu0 %v457
      %v517 = vpop.f32.mrf.mxu0
      %v518 = vadd.f32 0.0, %v517
      %519 = vmatmul.f32.gmra.mxu0 %v458
      %v520 = vpop.f32.mrf.mxu0
      %v521 = vadd.f32 0.0, %v520
      %522 = vmatmul.f32.gmra.mxu0 %v459
      %v523 = vpop.f32.mrf.mxu0
      %v524 = vadd.f32 0.0, %v523
      %525 = vmatmul.f32.gmra.mxu0 %v460
      %v526 = vpop.f32.mrf.mxu0
      %v527 = vadd.f32 0.0, %v526
      %528 = vmatmul.f32.gmra.mxu0 %v461
      %v529 = vpop.f32.mrf.mxu0
      %v530 = vadd.f32 0.0, %v529
      %531 = vmatmul.f32.gmra.mxu0 %v462
      %v532 = vpop.f32.mrf.mxu0
      %v533 = vadd.f32 0.0, %v532
      %534 = vmatmul.f32.gmra.mxu0 %v463
      %v535 = vpop.f32.mrf.mxu0
      %v536 = vadd.f32 0.0, %v535
      %537 = vmatmul.f32.gmra.mxu0 %v464
      %v538 = vpop.f32.mrf.mxu0
      %v539 = vadd.f32 0.0, %v538
      %540 = vmatmul.f32.gmra.mxu0 %v465
      %v541 = vpop.f32.mrf.mxu0
      %v542 = vadd.f32 0.0, %v541
      %543 = vmatmul.f32.gmra.mxu0 %v466
      %v544 = vpop.f32.mrf.mxu0
      %v545 = vadd.f32 0.0, %v544
      %546 = vmatmul.f32.gmra.mxu0 %v467
      %v547 = vpop.f32.mrf.mxu0
      %v548 = vadd.f32 0.0, %v547
      %549 = vmatmul.f32.gmra.mxu0 %v468
      %v550 = vpop.f32.mrf.mxu0
      %v551 = vadd.f32 0.0, %v550
      %552 = vmatmul.f32.gmra.mxu0 %v469
      %v553 = vpop.f32.mrf.mxu0
      %v554 = vadd.f32 0.0, %v553
      %555 = vmatmul.f32.gmra.mxu0 %v470
      %v556 = vpop.f32.mrf.mxu0
      %v557 = vadd.f32 0.0, %v556
      %558 = vmatmul.f32.gmra.mxu0 %v471
      %v559 = vpop.f32.mrf.mxu0
      %v560 = vadd.f32 0.0, %v559
      %561 = vmatmul.f32.gmra.mxu0 %v472
      %v562 = vpop.f32.mrf.mxu0
      %v563 = vadd.f32 0.0, %v562
      %564 = vdwg.mxu0
      %v565 = vmax.f32 %v422, %v491
      %v566 = vmax.f32 %v423, %v494
      %v567 = vmax.f32 %v424, %v497
      %v568 = vmax.f32 %v425, %v500
      %v569 = vmax.f32 %v426, %v503
      %v570 = vmax.f32 %v427, %v506
      %v571 = vmax.f32 %v428, %v509
      %v572 = vmax.f32 %v429, %v512
      %v573 = vmax.f32 %v430, %v515
      %v574 = vmax.f32 %v431, %v518
      %v575 = vmax.f32 %v432, %v521
      %v576 = vmax.f32 %v433, %v524
      %v577 = vmax.f32 %v434, %v527
      %v578 = vmax.f32 %v435, %v530
      %v579 = vmax.f32 %v436, %v533
      %v580 = vmax.f32 %v437, %v536
      %v581 = vmax.f32 %v438, %v539
      %v582 = vmax.f32 %v439, %v542
      %v583 = vmax.f32 %v440, %v545
      %v584 = vmax.f32 %v441, %v548
      %v585 = vmax.f32 %v442, %v551
      %v586 = vmax.f32 %v443, %v554
      %v587 = vmax.f32 %v444, %v557
      %v588 = vmax.f32 %v445, %v560
      %v589 = vmax.f32 %v446, %v563
      %s590 = scalar_lea.vmem %s165, 600
      %v591 = vld [vmem:[%s590] sm:$0xff]
      %v592 = vld [vmem:[%s590 + $0x8] sm:$0xff]
      %v593 = vld [vmem:[%s590 + $0x10] sm:$0xff]
      %v594 = vld [vmem:[%s590 + $0x18] sm:$0xff]
      %v595 = vld [vmem:[%s590 + $0x20] sm:$0xff]
      %v596 = vld [vmem:[%s590 + $0x28] sm:$0xff]
      %v597 = vld [vmem:[%s590 + $0x30] sm:$0xff]
      %v598 = vld [vmem:[%s590 + $0x38] sm:$0xff]
      %v599 = vld [vmem:[%s590 + $0x40] sm:$0xff]
      %v600 = vld [vmem:[%s590 + $0x48] sm:$0xff]
      %v601 = vld [vmem:[%s590 + $0x50] sm:$0xff]
      %v602 = vld [vmem:[%s590 + $0x58] sm:$0xff]
      %v603 = vld [vmem:[%s590 + $0x60] sm:$0xff]
      %v604 = vld [vmem:[%s590 + $0x68] sm:$0xff]
      %v605 = vld [vmem:[%s590 + $0x70] sm:$0xff]
      %v606 = vld [vmem:[%s590 + $0x78] sm:$0xff]
      %v607 = vld [vmem:[%s590 + $0x80] sm:$0xff]
      %v608 = vld [vmem:[%s590 + $0x88] sm:$0xff]
      %v609 = vld [vmem:[%s590 + $0x90] sm:$0xff]
      %v610 = vld [vmem:[%s590 + $0x98] sm:$0xff]
      %v611 = vld [vmem:[%s590 + $0xa0] sm:$0xff]
      %v612 = vld [vmem:[%s590 + $0xa8] sm:$0xff]
      %v613 = vld [vmem:[%s590 + $0xb0] sm:$0xff]
      %v614 = vld [vmem:[%s590 + $0xb8] sm:$0xff]
      %v615 = vld [vmem:[%s590 + $0xc0] sm:$0xf]
      %616 = vmatpush.msra.mxu0 %v186
      %617 = vmatpush.msra.mxu0 %v185
      %618 = vmatpush.msra.mxu0 %v184
      %619 = vmatpush.msra.mxu0 %v183
      %620 = vmatpush.msra.mxu0 %v182
      %621 = vmatpush.msra.mxu0 %v181
      %622 = vmatpush.msra.mxu0 %v180
      %623 = vmatpush.msra.mxu0 %v179
      %624 = vmatpush.msra.mxu0 %v178
      %625 = vmatpush.msra.mxu0 %v177
      %626 = vmatpush.msra.mxu0 %v176
      %627 = vmatpush.msra.mxu0 %v175
      %628 = vmatpush.msra.mxu0 %v174
      %629 = vmatpush.msra.mxu0 %v173
      %630 = vmatpush.msra.mxu0 %v172
      %631 = vmatpush.msra.mxu0 %v171
      %632 = vmatmul.f32.gmra.mxu0 %v591
      %v633 = vpop.f32.mrf.mxu0
      %v634 = vadd.f32 0.0, %v633
      %635 = vmatmul.f32.gmra.mxu0 %v592
      %v636 = vpop.f32.mrf.mxu0
      %v637 = vadd.f32 0.0, %v636
      %638 = vmatmul.f32.gmra.mxu0 %v593
      %v639 = vpop.f32.mrf.mxu0
      %v640 = vadd.f32 0.0, %v639
      %641 = vmatmul.f32.gmra.mxu0 %v594
      %v642 = vpop.f32.mrf.mxu0
      %v643 = vadd.f32 0.0, %v642
      %644 = vmatmul.f32.gmra.mxu0 %v595
      %v645 = vpop.f32.mrf.mxu0
      %v646 = vadd.f32 0.0, %v645
      %647 = vmatmul.f32.gmra.mxu0 %v596
      %v648 = vpop.f32.mrf.mxu0
      %v649 = vadd.f32 0.0, %v648
      %650 = vmatmul.f32.gmra.mxu0 %v597
      %v651 = vpop.f32.mrf.mxu0
      %v652 = vadd.f32 0.0, %v651
      %653 = vmatmul.f32.gmra.mxu0 %v598
      %v654 = vpop.f32.mrf.mxu0
      %v655 = vadd.f32 0.0, %v654
      %656 = vmatmul.f32.gmra.mxu0 %v599
      %v657 = vpop.f32.mrf.mxu0
      %v658 = vadd.f32 0.0, %v657
      %659 = vmatmul.f32.gmra.mxu0 %v600
      %v660 = vpop.f32.mrf.mxu0
      %v661 = vadd.f32 0.0, %v660
      %662 = vmatmul.f32.gmra.mxu0 %v601
      %v663 = vpop.f32.mrf.mxu0
      %v664 = vadd.f32 0.0, %v663
      %665 = vmatmul.f32.gmra.mxu0 %v602
      %v666 = vpop.f32.mrf.mxu0
      %v667 = vadd.f32 0.0, %v666
      %668 = vmatmul.f32.gmra.mxu0 %v603
      %v669 = vpop.f32.mrf.mxu0
      %v670 = vadd.f32 0.0, %v669
      %671 = vmatmul.f32.gmra.mxu0 %v604
      %v672 = vpop.f32.mrf.mxu0
      %v673 = vadd.f32 0.0, %v672
      %674 = vmatmul.f32.gmra.mxu0 %v605
      %v675 = vpop.f32.mrf.mxu0
      %v676 = vadd.f32 0.0, %v675
      %677 = vmatmul.f32.gmra.mxu0 %v606
      %v678 = vpop.f32.mrf.mxu0
      %v679 = vadd.f32 0.0, %v678
      %680 = vmatmul.f32.gmra.mxu0 %v607
      %v681 = vpop.f32.mrf.mxu0
      %v682 = vadd.f32 0.0, %v681
      %683 = vmatmul.f32.gmra.mxu0 %v608
      %v684 = vpop.f32.mrf.mxu0
      %v685 = vadd.f32 0.0, %v684
      %686 = vmatmul.f32.gmra.mxu0 %v609
      %v687 = vpop.f32.mrf.mxu0
      %v688 = vadd.f32 0.0, %v687
      %689 = vmatmul.f32.gmra.mxu0 %v610
      %v690 = vpop.f32.mrf.mxu0
      %v691 = vadd.f32 0.0, %v690
      %692 = vmatmul.f32.gmra.mxu0 %v611
      %v693 = vpop.f32.mrf.mxu0
      %v694 = vadd.f32 0.0, %v693
      %695 = vmatmul.f32.gmra.mxu0 %v612
      %v696 = vpop.f32.mrf.mxu0
      %v697 = vadd.f32 0.0, %v696
      %698 = vmatmul.f32.gmra.mxu0 %v613
      %v699 = vpop.f32.mrf.mxu0
      %v700 = vadd.f32 0.0, %v699
      %701 = vmatmul.f32.gmra.mxu0 %v614
      %v702 = vpop.f32.mrf.mxu0
      %v703 = vadd.f32 0.0, %v702
      %704 = vmatmul.f32.gmra.mxu0 %v615
      %v705 = vpop.f32.mrf.mxu0
      %v706 = vadd.f32 0.0, %v705
      %707 = vdwg.mxu0
      %v708 = vmax.f32 %v565, %v634
      %v709 = vmax.f32 %v566, %v637
      %v710 = vmax.f32 %v567, %v640
      %v711 = vmax.f32 %v568, %v643
      %v712 = vmax.f32 %v569, %v646
      %v713 = vmax.f32 %v570, %v649
      %v714 = vmax.f32 %v571, %v652
      %v715 = vmax.f32 %v572, %v655
      %v716 = vmax.f32 %v573, %v658
      %v717 = vmax.f32 %v574, %v661
      %v718 = vmax.f32 %v575, %v664
      %v719 = vmax.f32 %v576, %v667
      %v720 = vmax.f32 %v577, %v670
      %v721 = vmax.f32 %v578, %v673
      %v722 = vmax.f32 %v579, %v676
      %v723 = vmax.f32 %v580, %v679
      %v724 = vmax.f32 %v581, %v682
      %v725 = vmax.f32 %v582, %v685
      %v726 = vmax.f32 %v583, %v688
      %v727 = vmax.f32 %v584, %v691
      %v728 = vmax.f32 %v585, %v694
      %v729 = vmax.f32 %v586, %v697
      %v730 = vmax.f32 %v587, %v700
      %v731 = vmax.f32 %v588, %v703
      %v732 = vmax.f32 %v589, %v706
      %v733 = vld [vmem:[%s2] sm:$0x1]
      %v735 = vperm.slane %v733, 0
      %v737 = vadd.f32 %v708, %v735
      %v738 = vadd.f32 %v709, %v735
      %v739 = vadd.f32 %v710, %v735
      %v740 = vadd.f32 %v711, %v735
      %v741 = vadd.f32 %v712, %v735
      %v742 = vadd.f32 %v713, %v735
      %v743 = vadd.f32 %v714, %v735
      %v744 = vadd.f32 %v715, %v735
      %v745 = vadd.f32 %v716, %v735
      %v746 = vadd.f32 %v717, %v735
      %v747 = vadd.f32 %v718, %v735
      %v748 = vadd.f32 %v719, %v735
      %v749 = vadd.f32 %v720, %v735
      %v750 = vadd.f32 %v721, %v735
      %v751 = vadd.f32 %v722, %v735
      %v752 = vadd.f32 %v723, %v735
      %v753 = vadd.f32 %v724, %v735
      %v754 = vadd.f32 %v725, %v735
      %v755 = vadd.f32 %v726, %v735
      %v756 = vadd.f32 %v727, %v735
      %v757 = vadd.f32 %v728, %v735
      %v758 = vadd.f32 %v729, %v735
      %v759 = vadd.f32 %v730, %v735
      %v760 = vadd.f32 %v731, %v735
      %v761 = vadd.f32 %v732, %v735
      %v762 = vmax.f32 %v737, 0.0
      %v763 = vmax.f32 %v738, 0.0
      %v764 = vmax.f32 %v739, 0.0
      %v765 = vmax.f32 %v740, 0.0
      %v766 = vmax.f32 %v741, 0.0
      %v767 = vmax.f32 %v742, 0.0
      %v768 = vmax.f32 %v743, 0.0
      %v769 = vmax.f32 %v744, 0.0
      %v770 = vmax.f32 %v745, 0.0
      %v771 = vmax.f32 %v746, 0.0
      %v772 = vmax.f32 %v747, 0.0
      %v773 = vmax.f32 %v748, 0.0
      %v774 = vmax.f32 %v749, 0.0
      %v775 = vmax.f32 %v750, 0.0
      %v776 = vmax.f32 %v751, 0.0
      %v777 = vmax.f32 %v752, 0.0
      %v778 = vmax.f32 %v753, 0.0
      %v779 = vmax.f32 %v754, 0.0
      %v780 = vmax.f32 %v755, 0.0
      %v781 = vmax.f32 %v756, 0.0
      %v782 = vmax.f32 %v757, 0.0
      %v783 = vmax.f32 %v758, 0.0
      %v784 = vmax.f32 %v759, 0.0
      %v785 = vmax.f32 %v760, 0.0
      %v786 = vmax.f32 %v761, 0.0
      %vm787 = vcmask 261120
      %788 = vst.msk [vmem:[%s170] sm:$0xff] %vm787, %v762
      %789 = vst.msk [vmem:[%s170 + $0x8] sm:$0xff] %vm787, %v763
      %790 = vst.msk [vmem:[%s170 + $0x10] sm:$0xff] %vm787, %v764
      %791 = vst.msk [vmem:[%s170 + $0x18] sm:$0xff] %vm787, %v765
      %792 = vst.msk [vmem:[%s170 + $0x20] sm:$0xff] %vm787, %v766
      %793 = vst.msk [vmem:[%s170 + $0x28] sm:$0xff] %vm787, %v767
      %794 = vst.msk [vmem:[%s170 + $0x30] sm:$0xff] %vm787, %v768
      %795 = vst.msk [vmem:[%s170 + $0x38] sm:$0xff] %vm787, %v769
      %796 = vst.msk [vmem:[%s170 + $0x40] sm:$0xff] %vm787, %v770
      %797 = vst.msk [vmem:[%s170 + $0x48] sm:$0xff] %vm787, %v771
      %798 = vst.msk [vmem:[%s170 + $0x50] sm:$0xff] %vm787, %v772
      %799 = vst.msk [vmem:[%s170 + $0x58] sm:$0xff] %vm787, %v773
      %800 = vst.msk [vmem:[%s170 + $0x60] sm:$0xff] %vm787, %v774
      %801 = vst.msk [vmem:[%s170 + $0x68] sm:$0xff] %vm787, %v775
      %802 = vst.msk [vmem:[%s170 + $0x70] sm:$0xff] %vm787, %v776
      %803 = vst.msk [vmem:[%s170 + $0x78] sm:$0xff] %vm787, %v777
      %804 = vst.msk [vmem:[%s170 + $0x80] sm:$0xff] %vm787, %v778
      %805 = vst.msk [vmem:[%s170 + $0x88] sm:$0xff] %vm787, %v779
      %806 = vst.msk [vmem:[%s170 + $0x90] sm:$0xff] %vm787, %v780
      %807 = vst.msk [vmem:[%s170 + $0x98] sm:$0xff] %vm787, %v781
      %808 = vst.msk [vmem:[%s170 + $0xa0] sm:$0xff] %vm787, %v782
      %809 = vst.msk [vmem:[%s170 + $0xa8] sm:$0xff] %vm787, %v783
      %810 = vst.msk [vmem:[%s170 + $0xb0] sm:$0xff] %vm787, %v784
      %811 = vst.msk [vmem:[%s170 + $0xb8] sm:$0xff] %vm787, %v785
      %vm812 = vcmask 257024
      %813 = vst.msk [vmem:[%s170 + $0xc0] sm:$0xf] %vm812, %v786
      %p814 = scmp.lt.s32.totalorder %s14, 1
      %s815 = scalar_select %p814, %s14, 1
      %s816 = smul.addr %s815, 25
      %s817 = smul.addr %s816, 8
      %s818 = scalar_lea.vmem %s3, %s817
      // Predicated region
      $region33: #{forward.3} parent=31 // pred_check
        %p819 = pneg %p100
      $region34: #{forward.3} parent=31 // pred_check_branch
        %821 = sbr.rel (%p819) target = $region36
      $region35: #{forward.3} parent=31 // pred_region
        _
      $region36: #{forward.3} parent=31 // pred_fallthru
        _
    $region32: #{forward.3} parent=5 // pred_fallthru
      _
    %p822 = scmp.le.s32.totalorder 2, %s9
    // Predicated region
    $region37: #{forward.3} parent=5 // pred_check
      %p823 = pneg %p822
    $region38: #{forward.3} parent=5 // pred_check_branch
      %825 = sbr.rel (%p823) target = $region40
    $region39: #{forward.3} parent=5 // pred_region
      %s826 = ssub.s32 %s9, 2
      // Predicated region
      $region41: #{forward.3} parent=39 // pred_check
        %p827 = pneg %p106
      $region42: #{forward.3} parent=39 // pred_check_branch
        %829 = sbr.rel (%p827) target = $region44
      $region43: #{forward.3} parent=39 // pred_region
        %p830 = scmp.lt.s32.totalorder %s15, 1
        %s831 = scalar_select %p830, %s15, 1
        %s832 = smul.addr %s831, 25
        %s833 = smul.addr %s832, 8
        %s834 = scalar_lea.vmem %s3, %s833
      $region44: #{forward.3} parent=39 // pred_fallthru
        _
    $region40: #{forward.3} parent=5 // pred_fallthru
      _
  $region6: #{forward.3} parent=0 // loop_footer
    %s13 = sadd.s32 1, %s9
  $region7: #{forward.3} parent=0 // loop_footer_branch
    %8 = sbr.rel target = $region3
  $region8: #{forward.3} parent=0 // loop_exit
    _

// kernel: forward.4
$region0: #{forward.4}
  #allocation0 [shape = 'u32[]', space=smem, size = 0x4, offset = 0x4, fixed_abs, tag = 'smem constant byte address 0x4 - core index']
  #allocation1 [shape = 'u32[72,128]{1,0:T(1,128)}', space=vmem, size = 0x9000, scoped, tag = 'internal scratch']
  %s0 = inlined_call_operand.vmem [shape: f32[2,4,25,800], index: 0, kind: input, shape index: {}]
  %s1 = inlined_call_operand.vmem [shape: f32[800,16], index: 1, kind: input, shape index: {}]
  %s2 = inlined_call_operand.vmem [shape: f32[1,16], index: 2, kind: input, shape index: {}]
  %s3 = inlined_call_operand.vmem [shape: f32[2,25,16], index: 3, kind: output, shape index: {}]
  %s4 = sld [smem:[#allocation0]]
  $region45: #{forward.4} parent=0
    _
  %s6 = ssub.s32 1, %s4
  %s7 = scalar_select 0, %s6, %s4
  loop: start=0, step=1, limit=4
  $region2: #{forward.4} parent=0 // loop_pre_header
    _
  $region3: #{forward.4} parent=0 // loop_header
    %s9 = sphi 0, %s13
    %p10 = scmp.ge.s32.totalorder %s9, 4
    %s19 = sphi 0, %s21
    %s22 = sphi 0, %s19
    %s23 = sphi 0, %s22
    %s39 = sphi 0, %s23
    %s43 = sphi 0, %s43
    %s45 = sphi 0, %s43
    %s46 = sphi 0, %s45
    %s60 = sphi 0, %s46
    %s64 = sphi 0, %s64
    %s66 = sphi 0, %s64
    %s67 = sphi 0, %s66
    %s81 = sphi 0, %s67
    %s87 = sphi 0, %s89
    %s90 = sphi 0, %s87
    %s91 = sphi 0, %s90
    %s107 = sphi 0, %s91
  $region4: #{forward.4} parent=0 // loop_header_branch
    %12 = sbr.rel (%p10) target = $region8
  $region5: #{forward.4} parent=0 // loop_body
    %s14 = ssub.s32 %s9, 1
    %s15 = ssub.s32 %s9, 2
    %s16 = sadd.s32 %s9, 1
    %s17 = ssub.s32 %s9, %s16
    %p18 = scmp.eq.s32.totalorder %s17, 0
    %s20 = sadd.s32 %s19, 1
    %s21 = scalar_select %p18, %s19, %s20
    %p24 = pneg %p18
    %p25 = scmp.eq.s32.totalorder %s9, 1
    %p26 = por %p24, %p25
    %p27 = scmp.ne.s32.totalorder %s19, %s22
    %p28 = scmp.eq.s32.totalorder %s9, 0
    %p29 = por %p27, %p28
    %p30 = scmp.ne.s32.totalorder %s19, %s22
    %p31 = scmp.eq.s32.totalorder %s14, 1
    %p32 = por %p30, %p31
    %p33 = scmp.ne.s32.totalorder %s22, %s23
    %p34 = scmp.eq.s32.totalorder %s14, 0
    %p35 = por %p33, %p34
    %p36 = scmp.ne.s32.totalorder %s22, %s23
    %p37 = scmp.eq.s32.totalorder %s15, 1
    %p38 = por %p36, %p37
    %p40 = scmp.ne.s32.totalorder %s23, %s39
    %p41 = scmp.eq.s32.totalorder %s15, 0
    %p42 = por %p40, %p41
    %s44 = sadd.s32 %s43, 1
    %p47 = scmp.eq.s32.totalorder %s9, 1
    %p48 = scmp.ne.s32.totalorder %s43, %s45
    %p49 = scmp.eq.s32.totalorder %s9, 0
    %p50 = por %p48, %p49
    %p51 = scmp.ne.s32.totalorder %s43, %s45
    %p52 = scmp.eq.s32.totalorder %s14, 1
    %p53 = por %p51, %p52
    %p54 = scmp.ne.s32.totalorder %s45, %s46
    %p55 = scmp.eq.s32.totalorder %s14, 0
    %p56 = por %p54, %p55
    %p57 = scmp.ne.s32.totalorder %s45, %s46
    %p58 = scmp.eq.s32.totalorder %s15, 1
    %p59 = por %p57, %p58
    %p61 = scmp.ne.s32.totalorder %s46, %s60
    %p62 = scmp.eq.s32.totalorder %s15, 0
    %p63 = por %p61, %p62
    %s65 = sadd.s32 %s64, 1
    %p68 = scmp.eq.s32.totalorder %s9, 1
    %p69 = scmp.ne.s32.totalorder %s64, %s66
    %p70 = scmp.eq.s32.totalorder %s9, 0
    %p71 = por %p69, %p70
    %p72 = scmp.ne.s32.totalorder %s64, %s66
    %p73 = scmp.eq.s32.totalorder %s14, 1
    %p74 = por %p72, %p73
    %p75 = scmp.ne.s32.totalorder %s66, %s67
    %p76 = scmp.eq.s32.totalorder %s14, 0
    %p77 = por %p75, %p76
    %p78 = scmp.ne.s32.totalorder %s66, %s67
    %p79 = scmp.eq.s32.totalorder %s15, 1
    %p80 = por %p78, %p79
    %p82 = scmp.ne.s32.totalorder %s67, %s81
    %p83 = scmp.eq.s32.totalorder %s15, 0
    %p84 = por %p82, %p83
    %s85 = ssub.s32 %s9, %s16
    %p86 = scmp.eq.s32.totalorder %s85, 0
    %s88 = sadd.s32 %s87, 1
    %s89 = scalar_select %p86, %s87, %s88
    %p92 = pneg %p86
    %p93 = scmp.eq.s32.totalorder %s9, 1
    %p94 = por %p92, %p93
    %p95 = scmp.ne.s32.totalorder %s87, %s90
    %p96 = scmp.eq.s32.totalorder %s9, 0
    %p97 = por %p95, %p96
    %p98 = scmp.ne.s32.totalorder %s87, %s90
    %p99 = scmp.eq.s32.totalorder %s14, 1
    %p100 = por %p98, %p99
    %p101 = scmp.ne.s32.totalorder %s90, %s91
    %p102 = scmp.eq.s32.totalorder %s14, 0
    %p103 = por %p101, %p102
    %p104 = scmp.ne.s32.totalorder %s90, %s91
    %p105 = scmp.eq.s32.totalorder %s15, 1
    %p106 = por %p104, %p105
    %p108 = scmp.ne.s32.totalorder %s91, %s107
    %p109 = scmp.eq.s32.totalorder %s15, 0
    %p110 = por %p108, %p109
    %p111 = scmp.le.s32.totalorder 1, %s9
    %p112 = scmp.lt.s32.totalorder %s9, 3
    %p113 = pnand %p111, %p112
    %p114 = pneg %p113
    // Predicated region
    $region9: #{forward.4} parent=5 // pred_check
      _
    $region10: #{forward.4} parent=5 // pred_check_branch
      %116 = sbr.rel (%p113) target = $region12
    $region11: #{forward.4} parent=5 // pred_region
      %s117 = ssub.s32 %s9, 1
      // Predicated region
      $region13: #{forward.4} parent=11 // pred_check
        %p118 = pneg %p56
      $region14: #{forward.4} parent=11 // pred_check_branch
        %120 = sbr.rel (%p118) target = $region16
      $region15: #{forward.4} parent=11 // pred_region
        _
      $region16: #{forward.4} parent=11 // pred_fallthru
        _
      // Predicated region
      $region17: #{forward.4} parent=11 // pred_check
        %p121 = pneg %p77
      $region18: #{forward.4} parent=11 // pred_check_branch
        %123 = sbr.rel (%p121) target = $region20
      $region19: #{forward.4} parent=11 // pred_region
        _
      $region20: #{forward.4} parent=11 // pred_fallthru
        _
    $region12: #{forward.4} parent=5 // pred_fallthru
      _
    %p124 = scmp.lt.s32.totalorder %s9, 2
    // Predicated region
    $region21: #{forward.4} parent=5 // pred_check
      %p125 = pneg %p124
    $region22: #{forward.4} parent=5 // pred_check_branch
      %127 = sbr.rel (%p125) target = $region24
    $region23: #{forward.4} parent=5 // pred_region
      // Predicated region
      $region25: #{forward.4} parent=23 // pred_check
        %p128 = pneg %p29
      $region26: #{forward.4} parent=23 // pred_check_branch
        %130 = sbr.rel (%p128) target = $region28
      $region27: #{forward.4} parent=23 // pred_region
        %p131 = scmp.lt.s32.totalorder %s9, 1
        %s132 = scalar_select %p131, %s9, 1
        %s133 = smul.addr %s132, 112
        %s134 = smul.addr %s133, 8
        %s135 = scalar_lea.vmem %s0, %s134
      $region28: #{forward.4} parent=23 // pred_fallthru
        _
    $region24: #{forward.4} parent=5 // pred_fallthru
      _
    %p136 = scmp.le.s32.totalorder 1, %s9
    %p137 = scmp.lt.s32.totalorder %s9, 3
    %p138 = pnand %p136, %p137
    %p139 = pneg %p138
    // Predicated region
    $region29: #{forward.4} parent=5 // pred_check
      _
    $region30: #{forward.4} parent=5 // pred_check_branch
      %141 = sbr.rel (%p138) target = $region32
    $region31: #{forward.4} parent=5 // pred_region
      %s142 = ssub.s32 %s9, 1
      %p143 = scmp.lt.s32.totalorder %s14, 1
      %s144 = scalar_select %p143, %s14, 1
      %s145 = smul.addr %s144, 112
      %s146 = smul.addr %s145, 8
      %s147 = scalar_lea.vmem %s0, %s146
      %p148 = pneg %p35
      %p149 = pneg %p32
      %p150 = pneg %p56
      %p151 = pneg %p53
      %p152 = pneg %p77
      %p153 = pneg %p74
      %p154 = pneg %p103
      %p155 = pneg %p100
      %p156 = scmp.lt.s32.totalorder %s14, 1
      %s157 = scalar_select %p156, %s14, 1
      %s158 = smul.addr %s157, 4
      %s159 = smul.addr %s158, 8
      %s160 = scalar_lea.vmem %s3, %s159
      %p161 = scmp.lt.s32.totalorder %s14, 1
      %s162 = scalar_select %p161, %s14, 1
      %s163 = smul.addr %s162, 112
      %s164 = smul.addr %s163, 8
      %s165 = scalar_lea.vmem %s0, %s164
      %p166 = scmp.lt.s32.totalorder %s14, 1
      %s167 = scalar_select %p166, %s14, 1
      %s168 = smul.addr %s167, 4
      %s169 = smul.addr %s168, 8
      %s170 = scalar_lea.vmem %s3, %s169
      %v171 = vld [vmem:[%s1] sm:$0xff]
      %v172 = vld [vmem:[%s1 + $0x8] sm:$0xff]
      %v173 = vld [vmem:[%s1 + $0x10] sm:$0xff]
      %v174 = vld [vmem:[%s1 + $0x18] sm:$0xff]
      %v175 = vld [vmem:[%s1 + $0x20] sm:$0xff]
      %v176 = vld [vmem:[%s1 + $0x28] sm:$0xff]
      %v177 = vld [vmem:[%s1 + $0x30] sm:$0xff]
      %v178 = vld [vmem:[%s1 + $0x38] sm:$0xff]
      %v179 = vld [vmem:[%s1 + $0x40] sm:$0xff]
      %v180 = vld [vmem:[%s1 + $0x48] sm:$0xff]
      %v181 = vld [vmem:[%s1 + $0x50] sm:$0xff]
      %v182 = vld [vmem:[%s1 + $0x58] sm:$0xff]
      %v183 = vld [vmem:[%s1 + $0x60] sm:$0xff]
      %v184 = vld [vmem:[%s1 + $0x68] sm:$0xff]
      %v185 = vld [vmem:[%s1 + $0x70] sm:$0xff]
      %v186 = vld [vmem:[%s1 + $0x78] sm:$0xff]
      %v187 = vld [vmem:[%s1 + $0x80] sm:$0xff]
      %v188 = vld [vmem:[%s1 + $0x88] sm:$0xff]
      %v189 = vld [vmem:[%s1 + $0x90] sm:$0xff]
      %v190 = vld [vmem:[%s1 + $0x98] sm:$0xff]
      %v191 = vld [vmem:[%s1 + $0xa0] sm:$0xff]
      %v192 = vld [vmem:[%s1 + $0xa8] sm:$0xff]
      %v193 = vld [vmem:[%s1 + $0xb0] sm:$0xff]
      %v194 = vld [vmem:[%s1 + $0xb8] sm:$0xff]
      %v195 = vld [vmem:[%s1 + $0xc0] sm:$0xff]
      %v196 = vld [vmem:[%s1 + $0xc8] sm:$0xff]
      %v197 = vld [vmem:[%s1 + $0xd0] sm:$0xff]
      %v198 = vld [vmem:[%s1 + $0xd8] sm:$0xff]
      %v199 = vld [vmem:[%s1 + $0xe0] sm:$0xff]
      %v200 = vld [vmem:[%s1 + $0xe8] sm:$0xff]
      %v201 = vld [vmem:[%s1 + $0xf0] sm:$0xff]
      %v202 = vld [vmem:[%s1 + $0xf8] sm:$0xff]
      %v203 = vld [vmem:[%s1 + $0x100] sm:$0xff]
      %v204 = vld [vmem:[%s1 + $0x108] sm:$0xff]
      %v205 = vld [vmem:[%s1 + $0x110] sm:$0xff]
      %v206 = vld [vmem:[%s1 + $0x118] sm:$0xff]
      %v207 = vld [vmem:[%s1 + $0x120] sm:$0xff]
      %v208 = vld [vmem:[%s1 + $0x128] sm:$0xff]
      %v209 = vld [vmem:[%s1 + $0x130] sm:$0xff]
      %v210 = vld [vmem:[%s1 + $0x138] sm:$0xff]
      %v211 = vld [vmem:[%s1 + $0x140] sm:$0xff]
      %v212 = vld [vmem:[%s1 + $0x148] sm:$0xff]
      %v213 = vld [vmem:[%s1 + $0x150] sm:$0xff]
      %v214 = vld [vmem:[%s1 + $0x158] sm:$0xff]
      %v215 = vld [vmem:[%s1 + $0x160] sm:$0xff]
      %v216 = vld [vmem:[%s1 + $0x168] sm:$0xff]
      %v217 = vld [vmem:[%s1 + $0x170] sm:$0xff]
      %v218 = vld [vmem:[%s1 + $0x178] sm:$0xff]
      %v219 = vld [vmem:[%s1 + $0x180] sm:$0xff]
      %v220 = vld [vmem:[%s1 + $0x188] sm:$0xff]
      %v221 = vld [vmem:[%s1 + $0x190] sm:$0xff]
      %v222 = vld [vmem:[%s1 + $0x198] sm:$0xff]
      %v223 = vld [vmem:[%s1 + $0x1a0] sm:$0xff]
      %v224 = vld [vmem:[%s1 + $0x1a8] sm:$0xff]
      %v225 = vld [vmem:[%s1 + $0x1b0] sm:$0xff]
      %v226 = vld [vmem:[%s1 + $0x1b8] sm:$0xff]
      %v227 = vld [vmem:[%s1 + $0x1c0] sm:$0xff]
      %v228 = vld [vmem:[%s1 + $0x1c8] sm:$0xff]
      %v229 = vld [vmem:[%s1 + $0x1d0] sm:$0xff]
      %v230 = vld [vmem:[%s1 + $0x1d8] sm:$0xff]
      %v231 = vld [vmem:[%s1 + $0x1e0] sm:$0xff]
      %v232 = vld [vmem:[%s1 + $0x1e8] sm:$0xff]
      %v233 = vld [vmem:[%s1 + $0x1f0] sm:$0xff]
      %v234 = vld [vmem:[%s1 + $0x1f8] sm:$0xff]
      %v235 = vld [vmem:[%s1 + $0x200] sm:$0xff]
      %v236 = vld [vmem:[%s1 + $0x208] sm:$0xff]
      %v237 = vld [vmem:[%s1 + $0x210] sm:$0xff]
      %v238 = vld [vmem:[%s1 + $0x218] sm:$0xff]
      %v239 = vld [vmem:[%s1 + $0x220] sm:$0xff]
      %v240 = vld [vmem:[%s1 + $0x228] sm:$0xff]
      %v241 = vld [vmem:[%s1 + $0x230] sm:$0xff]
      %v242 = vld [vmem:[%s1 + $0x238] sm:$0xff]
      %v243 = vld [vmem:[%s1 + $0x240] sm:$0xff]
      %v244 = vld [vmem:[%s1 + $0x248] sm:$0xff]
      %v245 = vld [vmem:[%s1 + $0x250] sm:$0xff]
      %v246 = vld [vmem:[%s1 + $0x258] sm:$0xff]
      %v247 = vld [vmem:[%s1 + $0x260] sm:$0xff]
      %v248 = vld [vmem:[%s1 + $0x268] sm:$0xff]
      %v249 = vld [vmem:[%s1 + $0x270] sm:$0xff]
      %v250 = vld [vmem:[%s1 + $0x278] sm:$0xff]
      %v251 = vld [vmem:[%s1 + $0x280] sm:$0xff]
      %v252 = vld [vmem:[%s1 + $0x288] sm:$0xff]
      %v253 = vld [vmem:[%s1 + $0x290] sm:$0xff]
      %v254 = vld [vmem:[%s1 + $0x298] sm:$0xff]
      %v255 = vld [vmem:[%s1 + $0x2a0] sm:$0xff]
      %v256 = vld [vmem:[%s1 + $0x2a8] sm:$0xff]
      %v257 = vld [vmem:[%s1 + $0x2b0] sm:$0xff]
      %v258 = vld [vmem:[%s1 + $0x2b8] sm:$0xff]
      %v259 = vld [vmem:[%s1 + $0x2c0] sm:$0xff]
      %v260 = vld [vmem:[%s1 + $0x2c8] sm:$0xff]
      %v261 = vld [vmem:[%s1 + $0x2d0] sm:$0xff]
      %v262 = vld [vmem:[%s1 + $0x2d8] sm:$0xff]
      %v263 = vld [vmem:[%s1 + $0x2e0] sm:$0xff]
      %v264 = vld [vmem:[%s1 + $0x2e8] sm:$0xff]
      %v265 = vld [vmem:[%s1 + $0x2f0] sm:$0xff]
      %v266 = vld [vmem:[%s1 + $0x2f8] sm:$0xff]
      %v267 = vld [vmem:[%s1 + $0x300] sm:$0xff]
      %v268 = vld [vmem:[%s1 + $0x308] sm:$0xff]
      %v269 = vld [vmem:[%s1 + $0x310] sm:$0xff]
      %v270 = vld [vmem:[%s1 + $0x318] sm:$0xff]
      %v271 = vld [vmem:[%s165] sm:$0xff]
      %v272 = vld [vmem:[%s165 + $0x8] sm:$0xff]
      %v273 = vld [vmem:[%s165 + $0x10] sm:$0xff]
      %v274 = vld [vmem:[%s165 + $0x18] sm:$0xff]
      %v275 = vld [vmem:[%s165 + $0x20] sm:$0xff]
      %v276 = vld [vmem:[%s165 + $0x28] sm:$0xff]
      %v277 = vld [vmem:[%s165 + $0x30] sm:$0xff]
      %v278 = vld [vmem:[%s165 + $0x38] sm:$0xff]
      %v279 = vld [vmem:[%s165 + $0x40] sm:$0xff]
      %v280 = vld [vmem:[%s165 + $0x48] sm:$0xff]
      %v281 = vld [vmem:[%s165 + $0x50] sm:$0xff]
      %v282 = vld [vmem:[%s165 + $0x58] sm:$0xff]
      %v283 = vld [vmem:[%s165 + $0x60] sm:$0xff]
      %v284 = vld [vmem:[%s165 + $0x68] sm:$0xff]
      %v285 = vld [vmem:[%s165 + $0x70] sm:$0xff]
      %v286 = vld [vmem:[%s165 + $0x78] sm:$0xff]
      %v287 = vld [vmem:[%s165 + $0x80] sm:$0xff]
      %v288 = vld [vmem:[%s165 + $0x88] sm:$0xff]
      %v289 = vld [vmem:[%s165 + $0x90] sm:$0xff]
      %v290 = vld [vmem:[%s165 + $0x98] sm:$0xff]
      %v291 = vld [vmem:[%s165 + $0xa0] sm:$0xff]
      %v292 = vld [vmem:[%s165 + $0xa8] sm:$0x1]
      %v293 = vld [vmem:[%s165 + $0xb0] sm:$0x1]
      %v294 = vld [vmem:[%s165 + $0xb8] sm:$0x1]
      %v295 = vld [vmem:[%s165 + $0xc0] sm:$0x1]
      %v296 = vld [vmem:[%s165 + $0xc8] sm:$0x1]
      %v297 = vld [vmem:[%s165 + $0xd0] sm:$0x1]
      %v298 = vld [vmem:[%s165 + $0xd8] sm:$0x1]
      %vm299 = vcmask 261120
      %v301 = vsel %vm299, %v277, 0
      %v304 = vsel %vm299, %v284, 0
      %v307 = vsel %vm299, %v291, 0
      %v310 = vsel %vm299, %v298, 0
      %312 = vmatpush.msra.mxu0 %v186
      %313 = vmatpush.msra.mxu0 %v185
      %314 = vmatpush.msra.mxu0 %v184
      %315 = vmatpush.msra.mxu0 %v183
      %316 = vmatpush.msra.mxu0 %v182
      %317 = vmatpush.msra.mxu0 %v181
      %318 = vmatpush.msra.mxu0 %v180
      %319 = vmatpush.msra.mxu0 %v179
      %320 = vmatpush.msra.mxu0 %v178
      %321 = vmatpush.msra.mxu0 %v177
      %322 = vmatpush.msra.mxu0 %v176
      %323 = vmatpush.msra.mxu0 %v175
      %324 = vmatpush.msra.mxu0 %v174
      %325 = vmatpush.msra.mxu0 %v173
      %326 = vmatpush.msra.mxu0 %v172
      %327 = vmatpush.msra.mxu0 %v171
      %328 = vmatmul.f32.gmra.mxu0 %v271
      %v329 = vpop.f32.mrf.mxu0
      %v330 = vadd.f32 0.0, %v329
      %331 = vmatmul.f32.gmra.mxu0 %v278
      %v332 = vpop.f32.mrf.mxu0
      %v333 = vadd.f32 0.0, %v332
      %334 = vmatmul.f32.gmra.mxu0 %v285
      %v335 = vpop.f32.mrf.mxu0
      %v336 = vadd.f32 0.0, %v335
      %337 = vmatmul.f32.gmra.mxu0 %v292
      %v338 = vpop.f32.mrf.mxu0
      %v339 = vadd.f32 0.0, %v338
      %340 = vdwg.mxu0
      %341 = vmatpush.msra.mxu0 %v202
      %342 = vmatpush.msra.mxu0 %v201
      %343 = vmatpush.msra.mxu0 %v200
      %344 = vmatpush.msra.mxu0 %v199
      %345 = vmatpush.msra.mxu0 %v198
      %346 = vmatpush.msra.mxu0 %v197
      %347 = vmatpush.msra.mxu0 %v196
      %348 = vmatpush.msra.mxu0 %v195
      %349 = vmatpush.msra.mxu0 %v194
      %350 = vmatpush.msra.mxu0 %v193
      %351 = vmatpush.msra.mxu0 %v192
      %352 = vmatpush.msra.mxu0 %v191
      %353 = vmatpush.msra.mxu0 %v190
      %354 = vmatpush.msra.mxu0 %v189
      %355 = vmatpush.msra.mxu0 %v188
      %356 = vmatpush.msra.mxu0 %v187
      %357 = vmatmul.f32.gmra.mxu0 %v272
      %v358 = vpop.f32.mrf.mxu0
      %v359 = vadd.f32 %v330, %v358
      %360 = vmatmul.f32.gmra.mxu0 %v279
      %v361 = vpop.f32.mrf.mxu0
      %v362 = vadd.f32 %v333, %v361
      %363 = vmatmul.f32.gmra.mxu0 %v286
      %v364 = vpop.f32.mrf.mxu0
      %v365 = vadd.f32 %v336, %v364
      %366 = vmatmul.f32.gmra.mxu0 %v293
      %v367 = vpop.f32.mrf.mxu0
      %v368 = vadd.f32 %v339, %v367
      %369 = vdwg.mxu0
      %370 = vmatpush.msra.mxu0 %v218
      %371 = vmatpush.msra.mxu0 %v217
      %372 = vmatpush.msra.mxu0 %v216
      %373 = vmatpush.msra.mxu0 %v215
      %374 = vmatpush.msra.mxu0 %v214
      %375 = vmatpush.msra.mxu0 %v213
      %376 = vmatpush.msra.mxu0 %v212
      %377 = vmatpush.msra.mxu0 %v211
      %378 = vmatpush.msra.mxu0 %v210
      %379 = vmatpush.msra.mxu0 %v209
      %380 = vmatpush.msra.mxu0 %v208
      %381 = vmatpush.msra.mxu0 %v207
      %382 = vmatpush.msra.mxu0 %v206
      %383 = vmatpush.msra.mxu0 %v205
      %384 = vmatpush.msra.mxu0 %v204
      %385 = vmatpush.msra.mxu0 %v203
      %386 = vmatmul.f32.gmra.mxu0 %v273
      %v387 = vpop.f32.mrf.mxu0
      %v388 = vadd.f32 %v359, %v387
      %389 = vmatmul.f32.gmra.mxu0 %v280
      %v390 = vpop.f32.mrf.mxu0
      %v391 = vadd.f32 %v362, %v390
      %392 = vmatmul.f32.gmra.mxu0 %v287
      %v393 = vpop.f32.mrf.mxu0
      %v394 = vadd.f32 %v365, %v393
      %395 = vmatmul.f32.gmra.mxu0 %v294
      %v396 = vpop.f32.mrf.mxu0
      %v397 = vadd.f32 %v368, %v396
      %398 = vdwg.mxu0
      %399 = vmatpush.msra.mxu0 %v234
      %400 = vmatpush.msra.mxu0 %v233
      %401 = vmatpush.msra.mxu0 %v232
      %402 = vmatpush.msra.mxu0 %v231
      %403 = vmatpush.msra.mxu0 %v230
      %404 = vmatpush.msra.mxu0 %v229
      %405 = vmatpush.msra.mxu0 %v228
      %406 = vmatpush.msra.mxu0 %v227
      %407 = vmatpush.msra.mxu0 %v226
      %408 = vmatpush.msra.mxu0 %v225
      %409 = vmatpush.msra.mxu0 %v224
      %410 = vmatpush.msra.mxu0 %v223
      %411 = vmatpush.msra.mxu0 %v222
      %412 = vmatpush.msra.mxu0 %v221
      %413 = vmatpush.msra.mxu0 %v220
      %414 = vmatpush.msra.mxu0 %v219
      %415 = vmatmul.f32.gmra.mxu0 %v274
      %v416 = vpop.f32.mrf.mxu0
      %v417 = vadd.f32 %v388, %v416
      %418 = vmatmul.f32.gmra.mxu0 %v281
      %v419 = vpop.f32.mrf.mxu0
      %v420 = vadd.f32 %v391, %v419
      %421 = vmatmul.f32.gmra.mxu0 %v288
      %v422 = vpop.f32.mrf.mxu0
      %v423 = vadd.f32 %v394, %v422
      %424 = vmatmul.f32.gmra.mxu0 %v295
      %v425 = vpop.f32.mrf.mxu0
      %v426 = vadd.f32 %v397, %v425
      %427 = vdwg.mxu0
      %428 = vmatpush.msra.mxu0 %v250
      %429 = vmatpush.msra.mxu0 %v249
      %430 = vmatpush.msra.mxu0 %v248
      %431 = vmatpush.msra.mxu0 %v247
      %432 = vmatpush.msra.mxu0 %v246
      %433 = vmatpush.msra.mxu0 %v245
      %434 = vmatpush.msra.mxu0 %v244
      %435 = vmatpush.msra.mxu0 %v243
      %436 = vmatpush.msra.mxu0 %v242
      %437 = vmatpush.msra.mxu0 %v241
      %438 = vmatpush.msra.mxu0 %v240
      %439 = vmatpush.msra.mxu0 %v239
      %440 = vmatpush.msra.mxu0 %v238
      %441 = vmatpush.msra.mxu0 %v237
      %442 = vmatpush.msra.mxu0 %v236
      %443 = vmatpush.msra.mxu0 %v235
      %444 = vmatmul.f32.gmra.mxu0 %v275
      %v445 = vpop.f32.mrf.mxu0
      %v446 = vadd.f32 %v417, %v445
      %447 = vmatmul.f32.gmra.mxu0 %v282
      %v448 = vpop.f32.mrf.mxu0
      %v449 = vadd.f32 %v420, %v448
      %450 = vmatmul.f32.gmra.mxu0 %v289
      %v451 = vpop.f32.mrf.mxu0
      %v452 = vadd.f32 %v423, %v451
      %453 = vmatmul.f32.gmra.mxu0 %v296
      %v454 = vpop.f32.mrf.mxu0
      %v455 = vadd.f32 %v426, %v454
      %456 = vdwg.mxu0
      %457 = vmatpush.msra.mxu0 %v266
      %458 = vmatpush.msra.mxu0 %v265
      %459 = vmatpush.msra.mxu0 %v264
      %460 = vmatpush.msra.mxu0 %v263
      %461 = vmatpush.msra.mxu0 %v262
      %462 = vmatpush.msra.mxu0 %v261
      %463 = vmatpush.msra.mxu0 %v260
      %464 = vmatpush.msra.mxu0 %v259
      %465 = vmatpush.msra.mxu0 %v258
      %466 = vmatpush.msra.mxu0 %v257
      %467 = vmatpush.msra.mxu0 %v256
      %468 = vmatpush.msra.mxu0 %v255
      %469 = vmatpush.msra.mxu0 %v254
      %470 = vmatpush.msra.mxu0 %v253
      %471 = vmatpush.msra.mxu0 %v252
      %472 = vmatpush.msra.mxu0 %v251
      %473 = vmatmul.f32.gmra.mxu0 %v276
      %v474 = vpop.f32.mrf.mxu0
      %v475 = vadd.f32 %v446, %v474
      %476 = vmatmul.f32.gmra.mxu0 %v283
      %v477 = vpop.f32.mrf.mxu0
      %v478 = vadd.f32 %v449, %v477
      %479 = vmatmul.f32.gmra.mxu0 %v290
      %v480 = vpop.f32.mrf.mxu0
      %v481 = vadd.f32 %v452, %v480
      %482 = vmatmul.f32.gmra.mxu0 %v297
      %v483 = vpop.f32.mrf.mxu0
      %v484 = vadd.f32 %v455, %v483
      %485 = vdwg.mxu0
      %486 = vmatpush.msra.mxu0 0.0
      %487 = vmatpush.msra.mxu0 0.0
      %488 = vmatpush.msra.mxu0 0.0
      %489 = vmatpush.msra.mxu0 0.0
      %490 = vmatpush.msra.mxu0 0.0
      %491 = vmatpush.msra.mxu0 0.0
      %492 = vmatpush.msra.mxu0 0.0
      %493 = vmatpush.msra.mxu0 0.0
      %494 = vmatpush.msra.mxu0 0.0
      %495 = vmatpush.msra.mxu0 0.0
      %496 = vmatpush.msra.mxu0 0.0
      %497 = vmatpush.msra.mxu0 0.0
      %498 = vmatpush.msra.mxu0 %v270
      %499 = vmatpush.msra.mxu0 %v269
      %500 = vmatpush.msra.mxu0 %v268
      %501 = vmatpush.msra.mxu0 %v267
      %502 = vmatmul.f32.gmra.mxu0 %v301
      %v503 = vpop.f32.mrf.mxu0
      %v504 = vadd.f32 %v475, %v503
      %505 = vmatmul.f32.gmra.mxu0 %v304
      %v506 = vpop.f32.mrf.mxu0
      %v507 = vadd.f32 %v478, %v506
      %508 = vmatmul.f32.gmra.mxu0 %v307
      %v509 = vpop.f32.mrf.mxu0
      %v510 = vadd.f32 %v481, %v509
      %511 = vmatmul.f32.gmra.mxu0 %v310
      %v512 = vpop.f32.mrf.mxu0
      %v513 = vadd.f32 %v484, %v512
      %514 = vdwg.mxu0
      %s515 = scalar_lea.vmem %s165, 224
      %v516 = vld [vmem:[%s515] sm:$0xff]
      %v517 = vld [vmem:[%s515 + $0x8] sm:$0xff]
      %v518 = vld [vmem:[%s515 + $0x10] sm:$0xff]
      %v519 = vld [vmem:[%s515 + $0x18] sm:$0xff]
      %v520 = vld [vmem:[%s515 + $0x20] sm:$0xff]
      %v521 = vld [vmem:[%s515 + $0x28] sm:$0xff]
      %v522 = vld [vmem:[%s515 + $0x30] sm:$0xff]
      %v523 = vld [vmem:[%s515 + $0x38] sm:$0xff]
      %v524 = vld [vmem:[%s515 + $0x40] sm:$0xff]
      %v525 = vld [vmem:[%s515 + $0x48] sm:$0xff]
      %v526 = vld [vmem:[%s515 + $0x50] sm:$0xff]
      %v527 = vld [vmem:[%s515 + $0x58] sm:$0xff]
      %v528 = vld [vmem:[%s515 + $0x60] sm:$0xff]
      %v529 = vld [vmem:[%s515 + $0x68] sm:$0xff]
      %v530 = vld [vmem:[%s515 + $0x70] sm:$0xff]
      %v531 = vld [vmem:[%s515 + $0x78] sm:$0xff]
      %v532 = vld [vmem:[%s515 + $0x80] sm:$0xff]
      %v533 = vld [vmem:[%s515 + $0x88] sm:$0xff]
      %v534 = vld [vmem:[%s515 + $0x90] sm:$0xff]
      %v535 = vld [vmem:[%s515 + $0x98] sm:$0xff]
      %v536 = vld [vmem:[%s515 + $0xa0] sm:$0xff]
      %v537 = vld [vmem:[%s515 + $0xa8] sm:$0x1]
      %v538 = vld [vmem:[%s515 + $0xb0] sm:$0x1]
      %v539 = vld [vmem:[%s515 + $0xb8] sm:$0x1]
      %v540 = vld [vmem:[%s515 + $0xc0] sm:$0x1]
      %v541 = vld [vmem:[%s515 + $0xc8] sm:$0x1]
      %v542 = vld [vmem:[%s515 + $0xd0] sm:$0x1]
      %v543 = vld [vmem:[%s515 + $0xd8] sm:$0x1]
      %v545 = vsel %vm299, %v522, 0
      %v548 = vsel %vm299, %v529, 0
      %v551 = vsel %vm299, %v536, 0
      %v554 = vsel %vm299, %v543, 0
      %556 = vmatpush.msra.mxu0 %v186
      %557 = vmatpush.msra.mxu0 %v185
      %558 = vmatpush.msra.mxu0 %v184
      %559 = vmatpush.msra.mxu0 %v183
      %560 = vmatpush.msra.mxu0 %v182
      %561 = vmatpush.msra.mxu0 %v181
      %562 = vmatpush.msra.mxu0 %v180
      %563 = vmatpush.msra.mxu0 %v179
      %564 = vmatpush.msra.mxu0 %v178
      %565 = vmatpush.msra.mxu0 %v177
      %566 = vmatpush.msra.mxu0 %v176
      %567 = vmatpush.msra.mxu0 %v175
      %568 = vmatpush.msra.mxu0 %v174
      %569 = vmatpush.msra.mxu0 %v173
      %570 = vmatpush.msra.mxu0 %v172
      %571 = vmatpush.msra.mxu0 %v171
      %572 = vmatmul.f32.gmra.mxu0 %v516
      %v573 = vpop.f32.mrf.mxu0
      %v574 = vadd.f32 0.0, %v573
      %575 = vmatmul.f32.gmra.mxu0 %v523
      %v576 = vpop.f32.mrf.mxu0
      %v577 = vadd.f32 0.0, %v576
      %578 = vmatmul.f32.gmra.mxu0 %v530
      %v579 = vpop.f32.mrf.mxu0
      %v580 = vadd.f32 0.0, %v579
      %581 = vmatmul.f32.gmra.mxu0 %v537
      %v582 = vpop.f32.mrf.mxu0
      %v583 = vadd.f32 0.0, %v582
      %584 = vdwg.mxu0
      %585 = vmatpush.msra.mxu0 %v202
      %586 = vmatpush.msra.mxu0 %v201
      %587 = vmatpush.msra.mxu0 %v200
      %588 = vmatpush.msra.mxu0 %v199
      %589 = vmatpush.msra.mxu0 %v198
      %590 = vmatpush.msra.mxu0 %v197
      %591 = vmatpush.msra.mxu0 %v196
      %592 = vmatpush.msra.mxu0 %v195
      %593 = vmatpush.msra.mxu0 %v194
      %594 = vmatpush.msra.mxu0 %v193
      %595 = vmatpush.msra.mxu0 %v192
      %596 = vmatpush.msra.mxu0 %v191
      %597 = vmatpush.msra.mxu0 %v190
      %598 = vmatpush.msra.mxu0 %v189
      %599 = vmatpush.msra.mxu0 %v188
      %600 = vmatpush.msra.mxu0 %v187
      %601 = vmatmul.f32.gmra.mxu0 %v517
      %v602 = vpop.f32.mrf.mxu0
      %v603 = vadd.f32 %v574, %v602
      %604 = vmatmul.f32.gmra.mxu0 %v524
      %v605 = vpop.f32.mrf.mxu0
      %v606 = vadd.f32 %v577, %v605
      %607 = vmatmul.f32.gmra.mxu0 %v531
      %v608 = vpop.f32.mrf.mxu0
      %v609 = vadd.f32 %v580, %v608
      %610 = vmatmul.f32.gmra.mxu0 %v538
      %v611 = vpop.f32.mrf.mxu0
      %v612 = vadd.f32 %v583, %v611
      %613 = vdwg.mxu0
      %614 = vmatpush.msra.mxu0 %v218
      %615 = vmatpush.msra.mxu0 %v217
      %616 = vmatpush.msra.mxu0 %v216
      %617 = vmatpush.msra.mxu0 %v215
      %618 = vmatpush.msra.mxu0 %v214
      %619 = vmatpush.msra.mxu0 %v213
      %620 = vmatpush.msra.mxu0 %v212
      %621 = vmatpush.msra.mxu0 %v211
      %622 = vmatpush.msra.mxu0 %v210
      %623 = vmatpush.msra.mxu0 %v209
      %624 = vmatpush.msra.mxu0 %v208
      %625 = vmatpush.msra.mxu0 %v207
      %626 = vmatpush.msra.mxu0 %v206
      %627 = vmatpush.msra.mxu0 %v205
      %628 = vmatpush.msra.mxu0 %v204
      %629 = vmatpush.msra.mxu0 %v203
      %630 = vmatmul.f32.gmra.mxu0 %v518
      %v631 = vpop.f32.mrf.mxu0
      %v632 = vadd.f32 %v603, %v631
      %633 = vmatmul.f32.gmra.mxu0 %v525
      %v634 = vpop.f32.mrf.mxu0
      %v635 = vadd.f32 %v606, %v634
      %636 = vmatmul.f32.gmra.mxu0 %v532
      %v637 = vpop.f32.mrf.mxu0
      %v638 = vadd.f32 %v609, %v637
      %639 = vmatmul.f32.gmra.mxu0 %v539
      %v640 = vpop.f32.mrf.mxu0
      %v641 = vadd.f32 %v612, %v640
      %642 = vdwg.mxu0
      %643 = vmatpush.msra.mxu0 %v234
      %644 = vmatpush.msra.mxu0 %v233
      %645 = vmatpush.msra.mxu0 %v232
      %646 = vmatpush.msra.mxu0 %v231
      %647 = vmatpush.msra.mxu0 %v230
      %648 = vmatpush.msra.mxu0 %v229
      %649 = vmatpush.msra.mxu0 %v228
      %650 = vmatpush.msra.mxu0 %v227
      %651 = vmatpush.msra.mxu0 %v226
      %652 = vmatpush.msra.mxu0 %v225
      %653 = vmatpush.msra.mxu0 %v224
      %654 = vmatpush.msra.mxu0 %v223
      %655 = vmatpush.msra.mxu0 %v222
      %656 = vmatpush.msra.mxu0 %v221
      %657 = vmatpush.msra.mxu0 %v220
      %658 = vmatpush.msra.mxu0 %v219
      %659 = vmatmul.f32.gmra.mxu0 %v519
      %v660 = vpop.f32.mrf.mxu0
      %v661 = vadd.f32 %v632, %v660
      %662 = vmatmul.f32.gmra.mxu0 %v526
      %v663 = vpop.f32.mrf.mxu0
      %v664 = vadd.f32 %v635, %v663
      %665 = vmatmul.f32.gmra.mxu0 %v533
      %v666 = vpop.f32.mrf.mxu0
      %v667 = vadd.f32 %v638, %v666
      %668 = vmatmul.f32.gmra.mxu0 %v540
      %v669 = vpop.f32.mrf.mxu0
      %v670 = vadd.f32 %v641, %v669
      %671 = vdwg.mxu0
      %672 = vmatpush.msra.mxu0 %v250
      %673 = vmatpush.msra.mxu0 %v249
      %674 = vmatpush.msra.mxu0 %v248
      %675 = vmatpush.msra.mxu0 %v247
      %676 = vmatpush.msra.mxu0 %v246
      %677 = vmatpush.msra.mxu0 %v245
      %678 = vmatpush.msra.mxu0 %v244
      %679 = vmatpush.msra.mxu0 %v243
      %680 = vmatpush.msra.mxu0 %v242
      %681 = vmatpush.msra.mxu0 %v241
      %682 = vmatpush.msra.mxu0 %v240
      %683 = vmatpush.msra.mxu0 %v239
      %684 = vmatpush.msra.mxu0 %v238
      %685 = vmatpush.msra.mxu0 %v237
      %686 = vmatpush.msra.mxu0 %v236
      %687 = vmatpush.msra.mxu0 %v235
      %688 = vmatmul.f32.gmra.mxu0 %v520
      %v689 = vpop.f32.mrf.mxu0
      %v690 = vadd.f32 %v661, %v689
      %691 = vmatmul.f32.gmra.mxu0 %v527
      %v692 = vpop.f32.mrf.mxu0
      %v693 = vadd.f32 %v664, %v692
      %694 = vmatmul.f32.gmra.mxu0 %v534
      %v695 = vpop.f32.mrf.mxu0
      %v696 = vadd.f32 %v667, %v695
      %697 = vmatmul.f32.gmra.mxu0 %v541
      %v698 = vpop.f32.mrf.mxu0
      %v699 = vadd.f32 %v670, %v698
      %700 = vdwg.mxu0
      %701 = vmatpush.msra.mxu0 %v266
      %702 = vmatpush.msra.mxu0 %v265
      %703 = vmatpush.msra.mxu0 %v264
      %704 = vmatpush.msra.mxu0 %v263
      %705 = vmatpush.msra.mxu0 %v262
      %706 = vmatpush.msra.mxu0 %v261
      %707 = vmatpush.msra.mxu0 %v260
      %708 = vmatpush.msra.mxu0 %v259
      %709 = vmatpush.msra.mxu0 %v258
      %710 = vmatpush.msra.mxu0 %v257
      %711 = vmatpush.msra.mxu0 %v256
      %712 = vmatpush.msra.mxu0 %v255
      %713 = vmatpush.msra.mxu0 %v254
      %714 = vmatpush.msra.mxu0 %v253
      %715 = vmatpush.msra.mxu0 %v252
      %716 = vmatpush.msra.mxu0 %v251
      %717 = vmatmul.f32.gmra.mxu0 %v521
      %v718 = vpop.f32.mrf.mxu0
      %v719 = vadd.f32 %v690, %v718
      %720 = vmatmul.f32.gmra.mxu0 %v528
      %v721 = vpop.f32.mrf.mxu0
      %v722 = vadd.f32 %v693, %v721
      %723 = vmatmul.f32.gmra.mxu0 %v535
      %v724 = vpop.f32.mrf.mxu0
      %v725 = vadd.f32 %v696, %v724
      %726 = vmatmul.f32.gmra.mxu0 %v542
      %v727 = vpop.f32.mrf.mxu0
      %v728 = vadd.f32 %v699, %v727
      %729 = vdwg.mxu0
      %730 = vmatpush.msra.mxu0 0.0
      %731 = vmatpush.msra.mxu0 0.0
      %732 = vmatpush.msra.mxu0 0.0
      %733 = vmatpush.msra.mxu0 0.0
      %734 = vmatpush.msra.mxu0 0.0
      %735 = vmatpush.msra.mxu0 0.0
      %736 = vmatpush.msra.mxu0 0.0
      %737 = vmatpush.msra.mxu0 0.0
      %738 = vmatpush.msra.mxu0 0.0
      %739 = vmatpush.msra.mxu0 0.0
      %740 = vmatpush.msra.mxu0 0.0
      %741 = vmatpush.msra.mxu0 0.0
      %742 = vmatpush.msra.mxu0 %v270
      %743 = vmatpush.msra.mxu0 %v269
      %744 = vmatpush.msra.mxu0 %v268
      %745 = vmatpush.msra.mxu0 %v267
      %746 = vmatmul.f32.gmra.mxu0 %v545
      %v747 = vpop.f32.mrf.mxu0
      %v748 = vadd.f32 %v719, %v747
      %749 = vmatmul.f32.gmra.mxu0 %v548
      %v750 = vpop.f32.mrf.mxu0
      %v751 = vadd.f32 %v722, %v750
      %752 = vmatmul.f32.gmra.mxu0 %v551
      %v753 = vpop.f32.mrf.mxu0
      %v754 = vadd.f32 %v725, %v753
      %755 = vmatmul.f32.gmra.mxu0 %v554
      %v756 = vpop.f32.mrf.mxu0
      %v757 = vadd.f32 %v728, %v756
      %758 = vdwg.mxu0
      %v759 = vmax.f32 %v504, %v748
      %v760 = vmax.f32 %v507, %v751
      %v761 = vmax.f32 %v510, %v754
      %v762 = vmax.f32 %v513, %v757
      %s763 = scalar_lea.vmem %s165, 448
      %v764 = vld [vmem:[%s763] sm:$0xff]
      %v765 = vld [vmem:[%s763 + $0x8] sm:$0xff]
      %v766 = vld [vmem:[%s763 + $0x10] sm:$0xff]
      %v767 = vld [vmem:[%s763 + $0x18] sm:$0xff]
      %v768 = vld [vmem:[%s763 + $0x20] sm:$0xff]
      %v769 = vld [vmem:[%s763 + $0x28] sm:$0xff]
      %v770 = vld [vmem:[%s763 + $0x30] sm:$0xff]
      %v771 = vld [vmem:[%s763 + $0x38] sm:$0xff]
      %v772 = vld [vmem:[%s763 + $0x40] sm:$0xff]
      %v773 = vld [vmem:[%s763 + $0x48] sm:$0xff]
      %v774 = vld [vmem:[%s763 + $0x50] sm:$0xff]
      %v775 = vld [vmem:[%s763 + $0x58] sm:$0xff]
      %v776 = vld [vmem:[%s763 + $0x60] sm:$0xff]
      %v777 = vld [vmem:[%s763 + $0x68] sm:$0xff]
      %v778 = vld [vmem:[%s763 + $0x70] sm:$0xff]
      %v779 = vld [vmem:[%s763 + $0x78] sm:$0xff]
      %v780 = vld [vmem:[%s763 + $0x80] sm:$0xff]
      %v781 = vld [vmem:[%s763 + $0x88] sm:$0xff]
      %v782 = vld [vmem:[%s763 + $0x90] sm:$0xff]
      %v783 = vld [vmem:[%s763 + $0x98] sm:$0xff]
      %v784 = vld [vmem:[%s763 + $0xa0] sm:$0xff]
      %v785 = vld [vmem:[%s763 + $0xa8] sm:$0x1]
      %v786 = vld [vmem:[%s763 + $0xb0] sm:$0x1]
      %v787 = vld [vmem:[%s763 + $0xb8] sm:$0x1]
      %v788 = vld [vmem:[%s763 + $0xc0] sm:$0x1]
      %v789 = vld [vmem:[%s763 + $0xc8] sm:$0x1]
      %v790 = vld [vmem:[%s763 + $0xd0] sm:$0x1]
      %v791 = vld [vmem:[%s763 + $0xd8] sm:$0x1]
      %v793 = vsel %vm299, %v770, 0
      %v796 = vsel %vm299, %v777, 0
      %v799 = vsel %vm299, %v784, 0
      %v802 = vsel %vm299, %v791, 0
      %804 = vmatpush.msra.mxu0 %v186
      %805 = vmatpush.msra.mxu0 %v185
      %806 = vmatpush.msra.mxu0 %v184
      %807 = vmatpush.msra.mxu0 %v183
      %808 = vmatpush.msra.mxu0 %v182
      %809 = vmatpush.msra.mxu0 %v181
      %810 = vmatpush.msra.mxu0 %v180
      %811 = vmatpush.msra.mxu0 %v179
      %812 = vmatpush.msra.mxu0 %v178
      %813 = vmatpush.msra.mxu0 %v177
      %814 = vmatpush.msra.mxu0 %v176
      %815 = vmatpush.msra.mxu0 %v175
      %816 = vmatpush.msra.mxu0 %v174
      %817 = vmatpush.msra.mxu0 %v173
      %818 = vmatpush.msra.mxu0 %v172
      %819 = vmatpush.msra.mxu0 %v171
      %820 = vmatmul.f32.gmra.mxu0 %v764
      %v821 = vpop.f32.mrf.mxu0
      %v822 = vadd.f32 0.0, %v821
      %823 = vmatmul.f32.gmra.mxu0 %v771
      %v824 = vpop.f32.mrf.mxu0
      %v825 = vadd.f32 0.0, %v824
      %826 = vmatmul.f32.gmra.mxu0 %v778
      %v827 = vpop.f32.mrf.mxu0
      %v828 = vadd.f32 0.0, %v827
      %829 = vmatmul.f32.gmra.mxu0 %v785
      %v830 = vpop.f32.mrf.mxu0
      %v831 = vadd.f32 0.0, %v830
      %832 = vdwg.mxu0
      %833 = vmatpush.msra.mxu0 %v202
      %834 = vmatpush.msra.mxu0 %v201
      %835 = vmatpush.msra.mxu0 %v200
      %836 = vmatpush.msra.mxu0 %v199
      %837 = vmatpush.msra.mxu0 %v198
      %838 = vmatpush.msra.mxu0 %v197
      %839 = vmatpush.msra.mxu0 %v196
      %840 = vmatpush.msra.mxu0 %v195
      %841 = vmatpush.msra.mxu0 %v194
      %842 = vmatpush.msra.mxu0 %v193
      %843 = vmatpush.msra.mxu0 %v192
      %844 = vmatpush.msra.mxu0 %v191
      %845 = vmatpush.msra.mxu0 %v190
      %846 = vmatpush.msra.mxu0 %v189
      %847 = vmatpush.msra.mxu0 %v188
      %848 = vmatpush.msra.mxu0 %v187
      %849 = vmatmul.f32.gmra.mxu0 %v765
      %v850 = vpop.f32.mrf.mxu0
      %v851 = vadd.f32 %v822, %v850
      %852 = vmatmul.f32.gmra.mxu0 %v772
      %v853 = vpop.f32.mrf.mxu0
      %v854 = vadd.f32 %v825, %v853
      %855 = vmatmul.f32.gmra.mxu0 %v779
      %v856 = vpop.f32.mrf.mxu0
      %v857 = vadd.f32 %v828, %v856
      %858 = vmatmul.f32.gmra.mxu0 %v786
      %v859 = vpop.f32.mrf.mxu0
      %v860 = vadd.f32 %v831, %v859
      %861 = vdwg.mxu0
      %862 = vmatpush.msra.mxu0 %v218
      %863 = vmatpush.msra.mxu0 %v217
      %864 = vmatpush.msra.mxu0 %v216
      %865 = vmatpush.msra.mxu0 %v215
      %866 = vmatpush.msra.mxu0 %v214
      %867 = vmatpush.msra.mxu0 %v213
      %868 = vmatpush.msra.mxu0 %v212
      %869 = vmatpush.msra.mxu0 %v211
      %870 = vmatpush.msra.mxu0 %v210
      %871 = vmatpush.msra.mxu0 %v209
      %872 = vmatpush.msra.mxu0 %v208
      %873 = vmatpush.msra.mxu0 %v207
      %874 = vmatpush.msra.mxu0 %v206
      %875 = vmatpush.msra.mxu0 %v205
      %876 = vmatpush.msra.mxu0 %v204
      %877 = vmatpush.msra.mxu0 %v203
      %878 = vmatmul.f32.gmra.mxu0 %v766
      %v879 = vpop.f32.mrf.mxu0
      %v880 = vadd.f32 %v851, %v879
      %881 = vmatmul.f32.gmra.mxu0 %v773
      %v882 = vpop.f32.mrf.mxu0
      %v883 = vadd.f32 %v854, %v882
      %884 = vmatmul.f32.gmra.mxu0 %v780
      %v885 = vpop.f32.mrf.mxu0
      %v886 = vadd.f32 %v857, %v885
      %887 = vmatmul.f32.gmra.mxu0 %v787
      %v888 = vpop.f32.mrf.mxu0
      %v889 = vadd.f32 %v860, %v888
      %890 = vdwg.mxu0
      %891 = vmatpush.msra.mxu0 %v234
      %892 = vmatpush.msra.mxu0 %v233
      %893 = vmatpush.msra.mxu0 %v232
      %894 = vmatpush.msra.mxu0 %v231
      %895 = vmatpush.msra.mxu0 %v230
      %896 = vmatpush.msra.mxu0 %v229
      %897 = vmatpush.msra.mxu0 %v228
      %898 = vmatpush.msra.mxu0 %v227
      %899 = vmatpush.msra.mxu0 %v226
      %900 = vmatpush.msra.mxu0 %v225
      %901 = vmatpush.msra.mxu0 %v224
      %902 = vmatpush.msra.mxu0 %v223
      %903 = vmatpush.msra.mxu0 %v222
      %904 = vmatpush.msra.mxu0 %v221
      %905 = vmatpush.msra.mxu0 %v220
      %906 = vmatpush.msra.mxu0 %v219
      %907 = vmatmul.f32.gmra.mxu0 %v767
      %v908 = vpop.f32.mrf.mxu0
      %v909 = vadd.f32 %v880, %v908
      %910 = vmatmul.f32.gmra.mxu0 %v774
      %v911 = vpop.f32.mrf.mxu0
      %v912 = vadd.f32 %v883, %v911
      %913 = vmatmul.f32.gmra.mxu0 %v781
      %v914 = vpop.f32.mrf.mxu0
      %v915 = vadd.f32 %v886, %v914
      %916 = vmatmul.f32.gmra.mxu0 %v788
      %v917 = vpop.f32.mrf.mxu0
      %v918 = vadd.f32 %v889, %v917
      %919 = vdwg.mxu0
      %920 = vmatpush.msra.mxu0 %v250
      %921 = vmatpush.msra.mxu0 %v249
      %922 = vmatpush.msra.mxu0 %v248
      %923 = vmatpush.msra.mxu0 %v247
      %924 = vmatpush.msra.mxu0 %v246
      %925 = vmatpush.msra.mxu0 %v245
      %926 = vmatpush.msra.mxu0 %v244
      %927 = vmatpush.msra.mxu0 %v243
      %928 = vmatpush.msra.mxu0 %v242
      %929 = vmatpush.msra.mxu0 %v241
      %930 = vmatpush.msra.mxu0 %v240
      %931 = vmatpush.msra.mxu0 %v239
      %932 = vmatpush.msra.mxu0 %v238
      %933 = vmatpush.msra.mxu0 %v237
      %934 = vmatpush.msra.mxu0 %v236
      %935 = vmatpush.msra.mxu0 %v235
      %936 = vmatmul.f32.gmra.mxu0 %v768
      %v937 = vpop.f32.mrf.mxu0
      %v938 = vadd.f32 %v909, %v937
      %939 = vmatmul.f32.gmra.mxu0 %v775
      %v940 = vpop.f32.mrf.mxu0
      %v941 = vadd.f32 %v912, %v940
      %942 = vmatmul.f32.gmra.mxu0 %v782
      %v943 = vpop.f32.mrf.mxu0
      %v944 = vadd.f32 %v915, %v943
      %945 = vmatmul.f32.gmra.mxu0 %v789
      %v946 = vpop.f32.mrf.mxu0
      %v947 = vadd.f32 %v918, %v946
      %948 = vdwg.mxu0
      %949 = vmatpush.msra.mxu0 %v266
      %950 = vmatpush.msra.mxu0 %v265
      %951 = vmatpush.msra.mxu0 %v264
      %952 = vmatpush.msra.mxu0 %v263
      %953 = vmatpush.msra.mxu0 %v262
      %954 = vmatpush.msra.mxu0 %v261
      %955 = vmatpush.msra.mxu0 %v260
      %956 = vmatpush.msra.mxu0 %v259
      %957 = vmatpush.msra.mxu0 %v258
      %958 = vmatpush.msra.mxu0 %v257
      %959 = vmatpush.msra.mxu0 %v256
      %960 = vmatpush.msra.mxu0 %v255
      %961 = vmatpush.msra.mxu0 %v254
      %962 = vmatpush.msra.mxu0 %v253
      %963 = vmatpush.msra.mxu0 %v252
      %964 = vmatpush.msra.mxu0 %v251
      %965 = vmatmul.f32.gmra.mxu0 %v769
      %v966 = vpop.f32.mrf.mxu0
      %v967 = vadd.f32 %v938, %v966
      %968 = vmatmul.f32.gmra.mxu0 %v776
      %v969 = vpop.f32.mrf.mxu0
      %v970 = vadd.f32 %v941, %v969
      %971 = vmatmul.f32.gmra.mxu0 %v783
      %v972 = vpop.f32.mrf.mxu0
      %v973 = vadd.f32 %v944, %v972
      %974 = vmatmul.f32.gmra.mxu0 %v790
      %v975 = vpop.f32.mrf.mxu0
      %v976 = vadd.f32 %v947, %v975
      %977 = vdwg.mxu0
      %978 = vmatpush.msra.mxu0 0.0
      %979 = vmatpush.msra.mxu0 0.0
      %980 = vmatpush.msra.mxu0 0.0
      %981 = vmatpush.msra.mxu0 0.0
      %982 = vmatpush.msra.mxu0 0.0
      %983 = vmatpush.msra.mxu0 0.0
      %984 = vmatpush.msra.mxu0 0.0
      %985 = vmatpush.msra.mxu0 0.0
      %986 = vmatpush.msra.mxu0 0.0
      %987 = vmatpush.msra.mxu0 0.0
      %988 = vmatpush.msra.mxu0 0.0
      %989 = vmatpush.msra.mxu0 0.0
      %990 = vmatpush.msra.mxu0 %v270
      %991 = vmatpush.msra.mxu0 %v269
      %992 = vmatpush.msra.mxu0 %v268
      %993 = vmatpush.msra.mxu0 %v267
      %994 = vmatmul.f32.gmra.mxu0 %v793
      %v995 = vpop.f32.mrf.mxu0
      %v996 = vadd.f32 %v967, %v995
      %997 = vmatmul.f32.gmra.mxu0 %v796
      %v998 = vpop.f32.mrf.mxu0
      %v999 = vadd.f32 %v970, %v998
      %1000 = vmatmul.f32.gmra.mxu0 %v799
      %v1001 = vpop.f32.mrf.mxu0
      %v1002 = vadd.f32 %v973, %v1001
      %1003 = vmatmul.f32.gmra.mxu0 %v802
      %v1004 = vpop.f32.mrf.mxu0
      %v1005 = vadd.f32 %v976, %v1004
      %1006 = vdwg.mxu0
      %v1007 = vmax.f32 %v759, %v996
      %v1008 = vmax.f32 %v760, %v999
      %v1009 = vmax.f32 %v761, %v1002
      %v1010 = vmax.f32 %v762, %v1005
      %s1011 = scalar_lea.vmem %s165, 672
      %v1012 = vld [vmem:[%s1011] sm:$0xff]
      %v1013 = vld [vmem:[%s1011 + $0x8] sm:$0xff]
      %v1014 = vld [vmem:[%s1011 + $0x10] sm:$0xff]
      %v1015 = vld [vmem:[%s1011 + $0x18] sm:$0xff]
      %v1016 = vld [vmem:[%s1011 + $0x20] sm:$0xff]
      %v1017 = vld [vmem:[%s1011 + $0x28] sm:$0xff]
      %v1018 = vld [vmem:[%s1011 + $0x30] sm:$0xff]
      %v1019 = vld [vmem:[%s1011 + $0x38] sm:$0xff]
      %v1020 = vld [vmem:[%s1011 + $0x40] sm:$0xff]
      %v1021 = vld [vmem:[%s1011 + $0x48] sm:$0xff]
      %v1022 = vld [vmem:[%s1011 + $0x50] sm:$0xff]
      %v1023 = vld [vmem:[%s1011 + $0x58] sm:$0xff]
      %v1024 = vld [vmem:[%s1011 + $0x60] sm:$0xff]
      %v1025 = vld [vmem:[%s1011 + $0x68] sm:$0xff]
      %v1026 = vld [vmem:[%s1011 + $0x70] sm:$0xff]
      %v1027 = vld [vmem:[%s1011 + $0x78] sm:$0xff]
      %v1028 = vld [vmem:[%s1011 + $0x80] sm:$0xff]
      %v1029 = vld [vmem:[%s1011 + $0x88] sm:$0xff]
      %v1030 = vld [vmem:[%s1011 + $0x90] sm:$0xff]
      %v1031 = vld [vmem:[%s1011 + $0x98] sm:$0xff]
      %v1032 = vld [vmem:[%s1011 + $0xa0] sm:$0xff]
      %v1033 = vld [vmem:[%s1011 + $0xa8] sm:$0x1]
      %v1034 = vld [vmem:[%s1011 + $0xb0] sm:$0x1]
      %v1035 = vld [vmem:[%s1011 + $0xb8] sm:$0x1]
      %v1036 = vld [vmem:[%s1011 + $0xc0] sm:$0x1]
      %v1037 = vld [vmem:[%s1011 + $0xc8] sm:$0x1]
      %v1038 = vld [vmem:[%s1011 + $0xd0] sm:$0x1]
      %v1039 = vld [vmem:[%s1011 + $0xd8] sm:$0x1]
      %v1041 = vsel %vm299, %v1018, 0
      %v1044 = vsel %vm299, %v1025, 0
      %v1047 = vsel %vm299, %v1032, 0
      %v1050 = vsel %vm299, %v1039, 0
      %1052 = vmatpush.msra.mxu0 %v186
      %1053 = vmatpush.msra.mxu0 %v185
      %1054 = vmatpush.msra.mxu0 %v184
      %1055 = vmatpush.msra.mxu0 %v183
      %1056 = vmatpush.msra.mxu0 %v182
      %1057 = vmatpush.msra.mxu0 %v181
      %1058 = vmatpush.msra.mxu0 %v180
      %1059 = vmatpush.msra.mxu0 %v179
      %1060 = vmatpush.msra.mxu0 %v178
      %1061 = vmatpush.msra.mxu0 %v177
      %1062 = vmatpush.msra.mxu0 %v176
      %1063 = vmatpush.msra.mxu0 %v175
      %1064 = vmatpush.msra.mxu0 %v174
      %1065 = vmatpush.msra.mxu0 %v173
      %1066 = vmatpush.msra.mxu0 %v172
      %1067 = vmatpush.msra.mxu0 %v171
      %1068 = vmatmul.f32.gmra.mxu0 %v1012
      %v1069 = vpop.f32.mrf.mxu0
      %v1070 = vadd.f32 0.0, %v1069
      %1071 = vmatmul.f32.gmra.mxu0 %v1019
      %v1072 = vpop.f32.mrf.mxu0
      %v1073 = vadd.f32 0.0, %v1072
      %1074 = vmatmul.f32.gmra.mxu0 %v1026
      %v1075 = vpop.f32.mrf.mxu0
      %v1076 = vadd.f32 0.0, %v1075
      %1077 = vmatmul.f32.gmra.mxu0 %v1033
      %v1078 = vpop.f32.mrf.mxu0
      %v1079 = vadd.f32 0.0, %v1078
      %1080 = vdwg.mxu0
      %1081 = vmatpush.msra.mxu0 %v202
      %1082 = vmatpush.msra.mxu0 %v201
      %1083 = vmatpush.msra.mxu0 %v200
      %1084 = vmatpush.msra.mxu0 %v199
      %1085 = vmatpush.msra.mxu0 %v198
      %1086 = vmatpush.msra.mxu0 %v197
      %1087 = vmatpush.msra.mxu0 %v196
      %1088 = vmatpush.msra.mxu0 %v195
      %1089 = vmatpush.msra.mxu0 %v194
      %1090 = vmatpush.msra.mxu0 %v193
      %1091 = vmatpush.msra.mxu0 %v192
      %1092 = vmatpush.msra.mxu0 %v191
      %1093 = vmatpush.msra.mxu0 %v190
      %1094 = vmatpush.msra.mxu0 %v189
      %1095 = vmatpush.msra.mxu0 %v188
      %1096 = vmatpush.msra.mxu0 %v187
      %1097 = vmatmul.f32.gmra.mxu0 %v1013
      %v1098 = vpop.f32.mrf.mxu0
      %v1099 = vadd.f32 %v1070, %v1098
      %1100 = vmatmul.f32.gmra.mxu0 %v1020
      %v1101 = vpop.f32.mrf.mxu0
      %v1102 = vadd.f32 %v1073, %v1101
      %1103 = vmatmul.f32.gmra.mxu0 %v1027
      %v1104 = vpop.f32.mrf.mxu0
      %v1105 = vadd.f32 %v1076, %v1104
      %1106 = vmatmul.f32.gmra.mxu0 %v1034
      %v1107 = vpop.f32.mrf.mxu0
      %v1108 = vadd.f32 %v1079, %v1107
      %1109 = vdwg.mxu0
      %1110 = vmatpush.msra.mxu0 %v218
      %1111 = vmatpush.msra.mxu0 %v217
      %1112 = vmatpush.msra.mxu0 %v216
      %1113 = vmatpush.msra.mxu0 %v215
      %1114 = vmatpush.msra.mxu0 %v214
      %1115 = vmatpush.msra.mxu0 %v213
      %1116 = vmatpush.msra.mxu0 %v212
      %1117 = vmatpush.msra.mxu0 %v211
      %1118 = vmatpush.msra.mxu0 %v210
      %1119 = vmatpush.msra.mxu0 %v209
      %1120 = vmatpush.msra.mxu0 %v208
      %1121 = vmatpush.msra.mxu0 %v207
      %1122 = vmatpush.msra.mxu0 %v206
      %1123 = vmatpush.msra.mxu0 %v205
      %1124 = vmatpush.msra.mxu0 %v204
      %1125 = vmatpush.msra.mxu0 %v203
      %1126 = vmatmul.f32.gmra.mxu0 %v1014
      %v1127 = vpop.f32.mrf.mxu0
      %v1128 = vadd.f32 %v1099, %v1127
      %1129 = vmatmul.f32.gmra.mxu0 %v1021
      %v1130 = vpop.f32.mrf.mxu0
      %v1131 = vadd.f32 %v1102, %v1130
      %1132 = vmatmul.f32.gmra.mxu0 %v1028
      %v1133 = vpop.f32.mrf.mxu0
      %v1134 = vadd.f32 %v1105, %v1133
      %1135 = vmatmul.f32.gmra.mxu0 %v1035
      %v1136 = vpop.f32.mrf.mxu0
      %v1137 = vadd.f32 %v1108, %v1136
      %1138 = vdwg.mxu0
      %1139 = vmatpush.msra.mxu0 %v234
      %1140 = vmatpush.msra.mxu0 %v233
      %1141 = vmatpush.msra.mxu0 %v232
      %1142 = vmatpush.msra.mxu0 %v231
      %1143 = vmatpush.msra.mxu0 %v230
      %1144 = vmatpush.msra.mxu0 %v229
      %1145 = vmatpush.msra.mxu0 %v228
      %1146 = vmatpush.msra.mxu0 %v227
      %1147 = vmatpush.msra.mxu0 %v226
      %1148 = vmatpush.msra.mxu0 %v225
      %1149 = vmatpush.msra.mxu0 %v224
      %1150 = vmatpush.msra.mxu0 %v223
      %1151 = vmatpush.msra.mxu0 %v222
      %1152 = vmatpush.msra.mxu0 %v221
      %1153 = vmatpush.msra.mxu0 %v220
      %1154 = vmatpush.msra.mxu0 %v219
      %1155 = vmatmul.f32.gmra.mxu0 %v1015
      %v1156 = vpop.f32.mrf.mxu0
      %v1157 = vadd.f32 %v1128, %v1156
      %1158 = vmatmul.f32.gmra.mxu0 %v1022
      %v1159 = vpop.f32.mrf.mxu0
      %v1160 = vadd.f32 %v1131, %v1159
      %1161 = vmatmul.f32.gmra.mxu0 %v1029
      %v1162 = vpop.f32.mrf.mxu0
      %v1163 = vadd.f32 %v1134, %v1162
      %1164 = vmatmul.f32.gmra.mxu0 %v1036
      %v1165 = vpop.f32.mrf.mxu0
      %v1166 = vadd.f32 %v1137, %v1165
      %1167 = vdwg.mxu0
      %1168 = vmatpush.msra.mxu0 %v250
      %1169 = vmatpush.msra.mxu0 %v249
      %1170 = vmatpush.msra.mxu0 %v248
      %1171 = vmatpush.msra.mxu0 %v247
      %1172 = vmatpush.msra.mxu0 %v246
      %1173 = vmatpush.msra.mxu0 %v245
      %1174 = vmatpush.msra.mxu0 %v244
      %1175 = vmatpush.msra.mxu0 %v243
      %1176 = vmatpush.msra.mxu0 %v242
      %1177 = vmatpush.msra.mxu0 %v241
      %1178 = vmatpush.msra.mxu0 %v240
      %1179 = vmatpush.msra.mxu0 %v239
      %1180 = vmatpush.msra.mxu0 %v238
      %1181 = vmatpush.msra.mxu0 %v237
      %1182 = vmatpush.msra.mxu0 %v236
      %1183 = vmatpush.msra.mxu0 %v235
      %1184 = vmatmul.f32.gmra.mxu0 %v1016
      %v1185 = vpop.f32.mrf.mxu0
      %v1186 = vadd.f32 %v1157, %v1185
      %1187 = vmatmul.f32.gmra.mxu0 %v1023
      %v1188 = vpop.f32.mrf.mxu0
      %v1189 = vadd.f32 %v1160, %v1188
      %1190 = vmatmul.f32.gmra.mxu0 %v1030
      %v1191 = vpop.f32.mrf.mxu0
      %v1192 = vadd.f32 %v1163, %v1191
      %1193 = vmatmul.f32.gmra.mxu0 %v1037
      %v1194 = vpop.f32.mrf.mxu0
      %v1195 = vadd.f32 %v1166, %v1194
      %1196 = vdwg.mxu0
      %1197 = vmatpush.msra.mxu0 %v266
      %1198 = vmatpush.msra.mxu0 %v265
      %1199 = vmatpush.msra.mxu0 %v264
      %1200 = vmatpush.msra.mxu0 %v263
      %1201 = vmatpush.msra.mxu0 %v262
      %1202 = vmatpush.msra.mxu0 %v261
      %1203 = vmatpush.msra.mxu0 %v260
      %1204 = vmatpush.msra.mxu0 %v259
      %1205 = vmatpush.msra.mxu0 %v258
      %1206 = vmatpush.msra.mxu0 %v257
      %1207 = vmatpush.msra.mxu0 %v256
      %1208 = vmatpush.msra.mxu0 %v255
      %1209 = vmatpush.msra.mxu0 %v254
      %1210 = vmatpush.msra.mxu0 %v253
      %1211 = vmatpush.msra.mxu0 %v252
      %1212 = vmatpush.msra.mxu0 %v251
      %1213 = vmatmul.f32.gmra.mxu0 %v1017
      %v1214 = vpop.f32.mrf.mxu0
      %v1215 = vadd.f32 %v1186, %v1214
      %1216 = vmatmul.f32.gmra.mxu0 %v1024
      %v1217 = vpop.f32.mrf.mxu0
      %v1218 = vadd.f32 %v1189, %v1217
      %1219 = vmatmul.f32.gmra.mxu0 %v1031
      %v1220 = vpop.f32.mrf.mxu0
      %v1221 = vadd.f32 %v1192, %v1220
      %1222 = vmatmul.f32.gmra.mxu0 %v1038
      %v1223 = vpop.f32.mrf.mxu0
      %v1224 = vadd.f32 %v1195, %v1223
      %1225 = vdwg.mxu0
      %1226 = vmatpush.msra.mxu0 0.0
      %1227 = vmatpush.msra.mxu0 0.0
      %1228 = vmatpush.msra.mxu0 0.0
      %1229 = vmatpush.msra.mxu0 0.0
      %1230 = vmatpush.msra.mxu0 0.0
      %1231 = vmatpush.msra.mxu0 0.0
      %1232 = vmatpush.msra.mxu0 0.0
      %1233 = vmatpush.msra.mxu0 0.0
      %1234 = vmatpush.msra.mxu0 0.0
      %1235 = vmatpush.msra.mxu0 0.0
      %1236 = vmatpush.msra.mxu0 0.0
      %1237 = vmatpush.msra.mxu0 0.0
      %1238 = vmatpush.msra.mxu0 %v270
      %1239 = vmatpush.msra.mxu0 %v269
      %1240 = vmatpush.msra.mxu0 %v268
      %1241 = vmatpush.msra.mxu0 %v267
      %1242 = vmatmul.f32.gmra.mxu0 %v1041
      %v1243 = vpop.f32.mrf.mxu0
      %v1244 = vadd.f32 %v1215, %v1243
      %1245 = vmatmul.f32.gmra.mxu0 %v1044
      %v1246 = vpop.f32.mrf.mxu0
      %v1247 = vadd.f32 %v1218, %v1246
      %1248 = vmatmul.f32.gmra.mxu0 %v1047
      %v1249 = vpop.f32.mrf.mxu0
      %v1250 = vadd.f32 %v1221, %v1249
      %1251 = vmatmul.f32.gmra.mxu0 %v1050
      %v1252 = vpop.f32.mrf.mxu0
      %v1253 = vadd.f32 %v1224, %v1252
      %1254 = vdwg.mxu0
      %v1255 = vmax.f32 %v1007, %v1244
      %v1256 = vmax.f32 %v1008, %v1247
      %v1257 = vmax.f32 %v1009, %v1250
      %v1258 = vmax.f32 %v1010, %v1253
      %v1259 = vld [vmem:[%s2] sm:$0x1]
      %v1261 = vperm.slane %v1259, 0
      %v1263 = vadd.f32 %v1255, %v1261
      %v1264 = vadd.f32 %v1256, %v1261
      %v1265 = vadd.f32 %v1257, %v1261
      %v1266 = vadd.f32 %v1258, %v1261
      %v1267 = vmax.f32 %v1263, 0.0
      %v1268 = vmax.f32 %v1264, 0.0
      %v1269 = vmax.f32 %v1265, 0.0
      %v1270 = vmax.f32 %v1266, 0.0
      %vm1271 = vcmask 130048
      %1272 = vst.msk [vmem:[%s170] sm:$0xff] %vm1271, %v1267
      %1273 = vst.msk [vmem:[%s170 + $0x8] sm:$0xff] %vm1271, %v1268
      %1274 = vst.msk [vmem:[%s170 + $0x10] sm:$0xff] %vm1271, %v1269
      %vm1275 = vcmask 122880
      %1276 = vst.msk [vmem:[%s170 + $0x18] sm:$0x1] %vm1275, %v1270
      %p1277 = scmp.lt.s32.totalorder %s14, 1
      %s1278 = scalar_select %p1277, %s14, 1
      %s1279 = smul.addr %s1278, 4
      %s1280 = smul.addr %s1279, 8
      %s1281 = scalar_lea.vmem %s3, %s1280
      // Predicated region
      $region33: #{forward.4} parent=31 // pred_check
        %p1282 = pneg %p100
      $region34: #{forward.4} parent=31 // pred_check_branch
        %1284 = sbr.rel (%p1282) target = $region36
      $region35: #{forward.4} parent=31 // pred_region
        _
      $region36: #{forward.4} parent=31 // pred_fallthru
        _
    $region32: #{forward.4} parent=5 // pred_fallthru
      _
    %p1285 = scmp.le.s32.totalorder 2, %s9
    // Predicated region
    $region37: #{forward.4} parent=5 // pred_check
      %p1286 = pneg %p1285
    $region38: #{forward.4} parent=5 // pred_check_branch
      %1288 = sbr.rel (%p1286) target = $region40
    $region39: #{forward.4} parent=5 // pred_region
      %s1289 = ssub.s32 %s9, 2
      // Predicated region
      $region41: #{forward.4} parent=39 // pred_check
        %p1290 = pneg %p106
      $region42: #{forward.4} parent=39 // pred_check_branch
        %1292 = sbr.rel (%p1290) target = $region44
      $region43: #{forward.4} parent=39 // pred_region
        %p1293 = scmp.lt.s32.totalorder %s15, 1
        %s1294 = scalar_select %p1293, %s15, 1
        %s1295 = smul.addr %s1294, 4
        %s1296 = smul.addr %s1295, 8
        %s1297 = scalar_lea.vmem %s3, %s1296
      $region44: #{forward.4} parent=39 // pred_fallthru
        _
    $region40: #{forward.4} parent=5 // pred_fallthru
      _
  $region6: #{forward.4} parent=0 // loop_footer
    %s13 = sadd.s32 1, %s9
  $region7: #{forward.4} parent=0 // loop_footer_branch
    %8 = sbr.rel target = $region3
  $region8: #{forward.4} parent=0 // loop_exit
    _

// kernel: forward.5
$region0: #{forward.5}
  #allocation0 [shape = 'u32[]', space=smem, size = 0x4, offset = 0x4, fixed_abs, tag = 'smem constant byte address 0x4 - core index']
  #allocation1 [shape = 'u32[72,128]{1,0:T(1,128)}', space=vmem, size = 0x9000, scoped, tag = 'internal scratch']
  %s0 = inlined_call_operand.vmem [shape: f32[8,400], index: 0, kind: input, shape index: {}]
  %s1 = inlined_call_operand.vmem [shape: f32[400,64], index: 1, kind: input, shape index: {}]
  %s2 = inlined_call_operand.vmem [shape: f32[1,64], index: 2, kind: input, shape index: {}]
  %s3 = inlined_call_operand.vmem [shape: f32[64,32], index: 3, kind: input, shape index: {}]
  %s4 = inlined_call_operand.vmem [shape: f32[1,32], index: 4, kind: input, shape index: {}]
  %s5 = inlined_call_operand.vmem [shape: f32[32,128], index: 5, kind: input, shape index: {}]
  %s6 = inlined_call_operand.vmem [shape: f32[1,128], index: 6, kind: input, shape index: {}]
  %s7 = inlined_call_operand.vmem [shape: f32[8,128], index: 7, kind: output, shape index: {}]
  %s8 = sld [smem:[#allocation0]]
  $region38: #{forward.5} parent=0
    _
  %s10 = ssub.s32 1, %s8
  %s11 = scalar_select 0, %s10, %s8
  // Predicated region
  $region2: #{forward.5} parent=0 // pred_check
    _
  $region3: #{forward.5} parent=0 // pred_check_branch
    %13 = sbr.rel (0) target = $region5
  $region4: #{forward.5} parent=0 // pred_region
    _
  $region5: #{forward.5} parent=0 // pred_fallthru
    _
  // Predicated region
  $region6: #{forward.5} parent=0 // pred_check
    _
  $region7: #{forward.5} parent=0 // pred_check_branch
    %15 = sbr.rel (0) target = $region9
  $region8: #{forward.5} parent=0 // pred_region
    _
  $region9: #{forward.5} parent=0 // pred_fallthru
    _
  // Predicated region
  $region10: #{forward.5} parent=0 // pred_check
    _
  $region11: #{forward.5} parent=0 // pred_check_branch
    %17 = sbr.rel (0) target = $region13
  $region12: #{forward.5} parent=0 // pred_region
    _
  $region13: #{forward.5} parent=0 // pred_fallthru
    _
  // Predicated region
  $region14: #{forward.5} parent=0 // pred_check
    _
  $region15: #{forward.5} parent=0 // pred_check_branch
    %19 = sbr.rel (0) target = $region17
  $region16: #{forward.5} parent=0 // pred_region
    _
  $region17: #{forward.5} parent=0 // pred_fallthru
    _
  // Predicated region
  $region18: #{forward.5} parent=0 // pred_check
    _
  $region19: #{forward.5} parent=0 // pred_check_branch
    %21 = sbr.rel (0) target = $region21
  $region20: #{forward.5} parent=0 // pred_region
    _
  $region21: #{forward.5} parent=0 // pred_fallthru
    _
  // Predicated region
  $region22: #{forward.5} parent=0 // pred_check
    _
  $region23: #{forward.5} parent=0 // pred_check_branch
    %23 = sbr.rel (0) target = $region25
  $region24: #{forward.5} parent=0 // pred_region
    _
  $region25: #{forward.5} parent=0 // pred_fallthru
    _
  // Predicated region
  $region26: #{forward.5} parent=0 // pred_check
    _
  $region27: #{forward.5} parent=0 // pred_check_branch
    %25 = sbr.rel (0) target = $region29
  $region28: #{forward.5} parent=0 // pred_region
    _
  $region29: #{forward.5} parent=0 // pred_fallthru
    _
  %v26 = vld [vmem:[%s0] sm:$0xff]
  %v27 = vld [vmem:[%s0 + $0x8] sm:$0xff]
  %v28 = vld [vmem:[%s0 + $0x10] sm:$0xff]
  %v29 = vld [vmem:[%s0 + $0x18] sm:$0xff]
  %v30 = vld [vmem:[%s1] sm:$0xff]
  %v31 = vld [vmem:[%s1 + $0x8] sm:$0xff]
  %v32 = vld [vmem:[%s1 + $0x10] sm:$0xff]
  %v33 = vld [vmem:[%s1 + $0x18] sm:$0xff]
  %v34 = vld [vmem:[%s1 + $0x20] sm:$0xff]
  %v35 = vld [vmem:[%s1 + $0x28] sm:$0xff]
  %v36 = vld [vmem:[%s1 + $0x30] sm:$0xff]
  %v37 = vld [vmem:[%s1 + $0x38] sm:$0xff]
  %v38 = vld [vmem:[%s1 + $0x40] sm:$0xff]
  %v39 = vld [vmem:[%s1 + $0x48] sm:$0xff]
  %v40 = vld [vmem:[%s1 + $0x50] sm:$0xff]
  %v41 = vld [vmem:[%s1 + $0x58] sm:$0xff]
  %v42 = vld [vmem:[%s1 + $0x60] sm:$0xff]
  %v43 = vld [vmem:[%s1 + $0x68] sm:$0xff]
  %v44 = vld [vmem:[%s1 + $0x70] sm:$0xff]
  %v45 = vld [vmem:[%s1 + $0x78] sm:$0xff]
  %v46 = vld [vmem:[%s1 + $0x80] sm:$0xff]
  %v47 = vld [vmem:[%s1 + $0x88] sm:$0xff]
  %v48 = vld [vmem:[%s1 + $0x90] sm:$0xff]
  %v49 = vld [vmem:[%s1 + $0x98] sm:$0xff]
  %v50 = vld [vmem:[%s1 + $0xa0] sm:$0xff]
  %v51 = vld [vmem:[%s1 + $0xa8] sm:$0xff]
  %v52 = vld [vmem:[%s1 + $0xb0] sm:$0xff]
  %v53 = vld [vmem:[%s1 + $0xb8] sm:$0xff]
  %v54 = vld [vmem:[%s1 + $0xc0] sm:$0xff]
  %v55 = vld [vmem:[%s1 + $0xc8] sm:$0xff]
  %v56 = vld [vmem:[%s1 + $0xd0] sm:$0xff]
  %v57 = vld [vmem:[%s1 + $0xd8] sm:$0xff]
  %v58 = vld [vmem:[%s1 + $0xe0] sm:$0xff]
  %v59 = vld [vmem:[%s1 + $0xe8] sm:$0xff]
  %v60 = vld [vmem:[%s1 + $0xf0] sm:$0xff]
  %v61 = vld [vmem:[%s1 + $0xf8] sm:$0xff]
  %v62 = vld [vmem:[%s1 + $0x100] sm:$0xff]
  %v63 = vld [vmem:[%s1 + $0x108] sm:$0xff]
  %v64 = vld [vmem:[%s1 + $0x110] sm:$0xff]
  %v65 = vld [vmem:[%s1 + $0x118] sm:$0xff]
  %v66 = vld [vmem:[%s1 + $0x120] sm:$0xff]
  %v67 = vld [vmem:[%s1 + $0x128] sm:$0xff]
  %v68 = vld [vmem:[%s1 + $0x130] sm:$0xff]
  %v69 = vld [vmem:[%s1 + $0x138] sm:$0xff]
  %v70 = vld [vmem:[%s1 + $0x140] sm:$0xff]
  %v71 = vld [vmem:[%s1 + $0x148] sm:$0xff]
  %v72 = vld [vmem:[%s1 + $0x150] sm:$0xff]
  %v73 = vld [vmem:[%s1 + $0x158] sm:$0xff]
  %v74 = vld [vmem:[%s1 + $0x160] sm:$0xff]
  %v75 = vld [vmem:[%s1 + $0x168] sm:$0xff]
  %v76 = vld [vmem:[%s1 + $0x170] sm:$0xff]
  %v77 = vld [vmem:[%s1 + $0x178] sm:$0xff]
  %v78 = vld [vmem:[%s1 + $0x180] sm:$0xff]
  %v79 = vld [vmem:[%s1 + $0x188] sm:$0xff]
  %v80 = vld [vmem:[%s2] sm:$0x1]
  %v82 = vperm.slane %v80, 0
  %vm84 = vcmask 130048
  %v86 = vsel %vm84, %v29, 0
  %88 = vmatpush.msra.mxu0 %v45
  %89 = vmatpush.msra.mxu0 %v44
  %90 = vmatpush.msra.mxu0 %v43
  %91 = vmatpush.msra.mxu0 %v42
  %92 = vmatpush.msra.mxu0 %v41
  %93 = vmatpush.msra.mxu0 %v40
  %94 = vmatpush.msra.mxu0 %v39
  %95 = vmatpush.msra.mxu0 %v38
  %96 = vmatpush.msra.mxu0 %v37
  %97 = vmatpush.msra.mxu0 %v36
  %98 = vmatpush.msra.mxu0 %v35
  %99 = vmatpush.msra.mxu0 %v34
  %100 = vmatpush.msra.mxu0 %v33
  %101 = vmatpush.msra.mxu0 %v32
  %102 = vmatpush.msra.mxu0 %v31
  %103 = vmatpush.msra.mxu0 %v30
  %104 = vmatmul.f32.gmra.mxu0 %v26
  %v105 = vpop.f32.mrf.mxu0
  %v106 = vadd.f32 %v82, %v105
  %107 = vdwg.mxu0
  %108 = vmatpush.msra.mxu0 %v61
  %109 = vmatpush.msra.mxu0 %v60
  %110 = vmatpush.msra.mxu0 %v59
  %111 = vmatpush.msra.mxu0 %v58
  %112 = vmatpush.msra.mxu0 %v57
  %113 = vmatpush.msra.mxu0 %v56
  %114 = vmatpush.msra.mxu0 %v55
  %115 = vmatpush.msra.mxu0 %v54
  %116 = vmatpush.msra.mxu0 %v53
  %117 = vmatpush.msra.mxu0 %v52
  %118 = vmatpush.msra.mxu0 %v51
  %119 = vmatpush.msra.mxu0 %v50
  %120 = vmatpush.msra.mxu0 %v49
  %121 = vmatpush.msra.mxu0 %v48
  %122 = vmatpush.msra.mxu0 %v47
  %123 = vmatpush.msra.mxu0 %v46
  %124 = vmatmul.f32.gmra.mxu0 %v27
  %v125 = vpop.f32.mrf.mxu0
  %v126 = vadd.f32 %v106, %v125
  %127 = vdwg.mxu0
  %128 = vmatpush.msra.mxu0 %v77
  %129 = vmatpush.msra.mxu0 %v76
  %130 = vmatpush.msra.mxu0 %v75
  %131 = vmatpush.msra.mxu0 %v74
  %132 = vmatpush.msra.mxu0 %v73
  %133 = vmatpush.msra.mxu0 %v72
  %134 = vmatpush.msra.mxu0 %v71
  %135 = vmatpush.msra.mxu0 %v70
  %136 = vmatpush.msra.mxu0 %v69
  %137 = vmatpush.msra.mxu0 %v68
  %138 = vmatpush.msra.mxu0 %v67
  %139 = vmatpush.msra.mxu0 %v66
  %140 = vmatpush.msra.mxu0 %v65
  %141 = vmatpush.msra.mxu0 %v64
  %142 = vmatpush.msra.mxu0 %v63
  %143 = vmatpush.msra.mxu0 %v62
  %144 = vmatmul.f32.gmra.mxu0 %v28
  %v145 = vpop.f32.mrf.mxu0
  %v146 = vadd.f32 %v126, %v145
  %147 = vdwg.mxu0
  %148 = vmatpush.msra.mxu0 0.0
  %149 = vmatpush.msra.mxu0 0.0
  %150 = vmatpush.msra.mxu0 0.0
  %151 = vmatpush.msra.mxu0 0.0
  %152 = vmatpush.msra.mxu0 0.0
  %153 = vmatpush.msra.mxu0 0.0
  %154 = vmatpush.msra.mxu0 0.0
  %155 = vmatpush.msra.mxu0 0.0
  %156 = vmatpush.msra.mxu0 0.0
  %157 = vmatpush.msra.mxu0 0.0
  %158 = vmatpush.msra.mxu0 0.0
  %159 = vmatpush.msra.mxu0 0.0
  %160 = vmatpush.msra.mxu0 0.0
  %161 = vmatpush.msra.mxu0 0.0
  %162 = vmatpush.msra.mxu0 %v79
  %163 = vmatpush.msra.mxu0 %v78
  %164 = vmatmul.f32.gmra.mxu0 %v86
  %v165 = vpop.f32.mrf.mxu0
  %v166 = vadd.f32 %v146, %v165
  %167 = vdwg.mxu0
  %v168 = vmax.f32 %v166, 0.0
  %v169 = vld [vmem:[%s3] sm:$0xff]
  %v170 = vld [vmem:[%s3 + $0x8] sm:$0xff]
  %v171 = vld [vmem:[%s3 + $0x10] sm:$0xff]
  %v172 = vld [vmem:[%s3 + $0x18] sm:$0xff]
  %v173 = vld [vmem:[%s3 + $0x20] sm:$0xff]
  %v174 = vld [vmem:[%s3 + $0x28] sm:$0xff]
  %v175 = vld [vmem:[%s3 + $0x30] sm:$0xff]
  %v176 = vld [vmem:[%s3 + $0x38] sm:$0xff]
  %v177 = vld [vmem:[%s4] sm:$0x1]
  %v179 = vperm.slane %v177, 0
  %vm181 = vcmask 523264
  %v183 = vsel %vm181, %v168, 0
  %185 = vmatpush.msra.mxu0 0.0
  %186 = vmatpush.msra.mxu0 0.0
  %187 = vmatpush.msra.mxu0 0.0
  %188 = vmatpush.msra.mxu0 0.0
  %189 = vmatpush.msra.mxu0 0.0
  %190 = vmatpush.msra.mxu0 0.0
  %191 = vmatpush.msra.mxu0 0.0
  %192 = vmatpush.msra.mxu0 0.0
  %193 = vmatpush.msra.mxu0 %v176
  %194 = vmatpush.msra.mxu0 %v175
  %195 = vmatpush.msra.mxu0 %v174
  %196 = vmatpush.msra.mxu0 %v173
  %197 = vmatpush.msra.mxu0 %v172
  %198 = vmatpush.msra.mxu0 %v171
  %199 = vmatpush.msra.mxu0 %v170
  %200 = vmatpush.msra.mxu0 %v169
  %201 = vmatmul.f32.gmra.mxu0 %v183
  %v202 = vpop.f32.mrf.mxu0
  %v203 = vadd.f32 %v179, %v202
  %204 = vdwg.mxu0
  %v205 = vmax.f32 %v203, 0.0
  %v206 = vld [vmem:[%s5] sm:$0xff]
  %v207 = vld [vmem:[%s5 + $0x8] sm:$0xff]
  %v208 = vld [vmem:[%s5 + $0x10] sm:$0xff]
  %v209 = vld [vmem:[%s5 + $0x18] sm:$0xff]
  %v210 = vld [vmem:[%s6] sm:$0x1]
  %v212 = vperm.slane %v210, 0
  %vm214 = vcmask 261120
  %v216 = vsel %vm214, %v205, 0
  %218 = vmatpush.msra.mxu0 0.0
  %219 = vmatpush.msra.mxu0 0.0
  %220 = vmatpush.msra.mxu0 0.0
  %221 = vmatpush.msra.mxu0 0.0
  %222 = vmatpush.msra.mxu0 0.0
  %223 = vmatpush.msra.mxu0 0.0
  %224 = vmatpush.msra.mxu0 0.0
  %225 = vmatpush.msra.mxu0 0.0
  %226 = vmatpush.msra.mxu0 0.0
  %227 = vmatpush.msra.mxu0 0.0
  %228 = vmatpush.msra.mxu0 0.0
  %229 = vmatpush.msra.mxu0 0.0
  %230 = vmatpush.msra.mxu0 %v209
  %231 = vmatpush.msra.mxu0 %v208
  %232 = vmatpush.msra.mxu0 %v207
  %233 = vmatpush.msra.mxu0 %v206
  %234 = vmatmul.f32.gmra.mxu0 %v216
  %v235 = vpop.f32.mrf.mxu0
  %v236 = vadd.f32 %v212, %v235
  %237 = vdwg.mxu0
  %238 = vst [vmem:[%s7] sm:$0xff] %v236
  // Predicated region
  $region30: #{forward.5} parent=0 // pred_check
    _
  $region31: #{forward.5} parent=0 // pred_check_branch
    %240 = sbr.rel (0) target = $region33
  $region32: #{forward.5} parent=0 // pred_region
    _
  $region33: #{forward.5} parent=0 // pred_fallthru
    _
  // Predicated region
  $region34: #{forward.5} parent=0 // pred_check
    _
  $region35: #{forward.5} parent=0 // pred_check_branch
    %242 = sbr.rel (0) target = $region37
  $region36: #{forward.5} parent=0 // pred_region
    _
  $region37: #{forward.5} parent=0 // pred_fallthru
    _

</llo_original>
